<compile_context>
chip_gen: v5e
topology: v5e:2x2
jax: 0.10.0
libtpu: 0.0.40
codegen_flags: <defaults>
</compile_context>

<pallas_src>
import functools

import jax
import jax.numpy as jnp
from jax.experimental import pallas as pl
from jax.experimental.pallas import tpu as pltpu

EPS = 1e-3      # BatchNorm2d(eps=0.001)
SLOPE = 0.1     # LeakyReLU(0.1)


def _vmem_spec():
    return pl.BlockSpec(memory_space=pltpu.MemorySpace.VMEM)


# ---------------------------------------------------------------------------
# Fused kernel: 1x1 identity -> BN1+LReLU -> conv3x3 -> BN2+LReLU -> conv3x3
#               -> residual add.
# All activations are (rows, W*C) lane-dense slabs; rows = N*H (row-major n,h).
# ---------------------------------------------------------------------------
def _residual_kernel(x_ref,                      # (N*H, W*Cin)  input, NHWC-flat
                     mtop_ref, mbot_ref,         # (N*H, 1)      H-boundary masks
                     g1_ref, b1_ref,             # (1, Cin)      BN1 gamma/beta
                     r1_ref, t1_ref,             # (W*Cin, Cin), (Cin, W*Cin)
                     bw1_ref,                    # (3, W*Cin, W*Cout) bf16 bands
                     g2_ref, b2_ref,             # (1, Cout)     BN2 gamma/beta
                     r2_ref, t2_ref,             # (W*Cout, Cout), (Cout, W*Cout)
                     bw2_ref,                    # (3, W*Cout, W*Cout) bf16 bands
                     wid_ref,                    # (W*Cin, W*Cout) bf16 kron(I_W, id_w)
                     o_ref,                      # (N*H, W*Cout) output (f32)
                     *, N, H, W, Cin, Cout):
    NH = N * H
    cnt = float(N * H * W)

    x = x_ref[...]                                            # (NH, W*Cin) f32

    # ---- identity 1x1 conv, written straight into o_ref so x dies early ----
    o_ref[...] = jnp.dot(x.astype(jnp.bfloat16), wid_ref[...],
                         preferred_element_type=jnp.float32)

    # ---- BN1 (training-mode batch stats, single pass, f32) + LeakyReLU ----
    s_l = jnp.sum(x, axis=0, keepdims=True)                   # (1, W*Cin)
    ss_l = jnp.sum(x * x, axis=0, keepdims=True)
    s_c = jnp.dot(s_l, r1_ref[...], preferred_element_type=jnp.float32)
    ss_c = jnp.dot(ss_l, r1_ref[...], preferred_element_type=jnp.float32)
    mean_c = s_c / cnt                                        # (1, Cin)
    var_c = ss_c / cnt - mean_c * mean_c                      # biased variance
    scale_c = g1_ref[...] * jax.lax.rsqrt(var_c + EPS)
    shift_c = b1_ref[...] - mean_c * scale_c
    scale = jnp.dot(scale_c, t1_ref[...], preferred_element_type=jnp.float32)
    shift = jnp.dot(shift_c, t1_ref[...], preferred_element_type=jnp.float32)
    h1 = x * scale + shift
    h1 = jnp.where(h1 >= 0, h1, SLOPE * h1)                   # (NH, W*Cin)
    # x is dead from here on.

    mtop = mtop_ref[...]                                      # (NH, 1) f32
    mbot = mbot_ref[...]

    def conv3x3(h, bw_ref):
        # H halo via XLU sublane rolls + boundary-row masks (no padded scratch,
        # no store+reload).  dw taps + W zero-padding are folded into bw bands.
        up = (pltpu.roll(h, 1, axis=0) * mtop).astype(jnp.bfloat16)   # row h-1
        mid = h.astype(jnp.bfloat16)                                  # row h
        dn = (pltpu.roll(h, NH - 1, axis=0) * mbot).astype(jnp.bfloat16)  # row h+1
        return (jnp.dot(up, bw_ref[0], preferred_element_type=jnp.float32)
                + jnp.dot(mid, bw_ref[1], preferred_element_type=jnp.float32)
                + jnp.dot(dn, bw_ref[2], preferred_element_type=jnp.float32))

    # ---- conv1: 3x3, stride 1, pad 1 ----
    acc1 = conv3x3(h1, bw1_ref)                               # (NH, W*Cout) f32

    # ---- BN2 + LeakyReLU ----
    s2_l = jnp.sum(acc1, axis=0, keepdims=True)
    ss2_l = jnp.sum(acc1 * acc1, axis=0, keepdims=True)
    s2_c = jnp.dot(s2_l, r2_ref[...], preferred_element_type=jnp.float32)
    ss2_c = jnp.dot(ss2_l, r2_ref[...], preferred_element_type=jnp.float32)
    mean2 = s2_c / cnt
    var2 = ss2_c / cnt - mean2 * mean2
    scale2_c = g2_ref[...] * jax.lax.rsqrt(var2 + EPS)
    shift2_c = b2_ref[...] - mean2 * scale2_c
    scale2 = jnp.dot(scale2_c, t2_ref[...], preferred_element_type=jnp.float32)
    shift2 = jnp.dot(shift2_c, t2_ref[...], preferred_element_type=jnp.float32)
    h2 = acc1 * scale2 + shift2
    h2 = jnp.where(h2 >= 0, h2, SLOPE * h2)                   # (NH, W*Cout)

    # ---- conv2: 3x3, stride 1, pad 1 ----
    acc2 = conv3x3(h2, bw2_ref)

    # ---- residual add (lane-dense store) ----
    o_ref[...] = o_ref[...] + acc2


# ---------------------------------------------------------------------------
# Host-side weight preparation (tiny, done once per call under jit)
# ---------------------------------------------------------------------------
def _band_weights(w_hwio, W):
    """(3,3,Cin,Cout) HWIO conv weight -> (3, W*Cin, W*Cout) banded matrices.

    B[dh][wi*Cin+ci, wo*Cout+co] = w[dh, wi-wo+1, ci, co] when 0<=wi-wo+1<=2,
    else 0.  The band structure implements both the dw taps and the zero
    padding along W.
    """
    _, _, cin, cout = w_hwio.shape
    mats = []
    for dh in range(3):
        acc = jnp.zeros((W * cin, W * cout), jnp.float32)
        for dw in range(3):
            sel = jnp.eye(W, W, k=1 - dw, dtype=jnp.float32)   # wi - wo = dw-1
            acc = acc + jnp.kron(sel, w_hwio[dh, dw].astype(jnp.float32))
        mats.append(acc)
    return jnp.stack(mats, axis=0)


def _channel_selectors(C, W):
    """tile matrix T (C, W*C): T[c, wi*C+ci] = 1 iff c == ci; reduce = T.T."""
    t = jnp.tile(jnp.eye(C, dtype=jnp.float32), (1, W))        # (C, W*C)
    return t.T, t                                              # (W*C, C), (C, W*C)


# ---------------------------------------------------------------------------
# NHWC entry point (preferred: no layout transposes around the kernel)
# ---------------------------------------------------------------------------
@jax.jit
def residual_forward_nhwc(x_nhwc, params):
    N, H, W, Cin = x_nhwc.shape
    Cout = params["conv1_w"].shape[-1]
    NH, WCin, WCout = N * H, W * Cin, W * Cout

    x_flat = x_nhwc.astype(jnp.float32).reshape(NH, WCin)      # lane-dense slab

    # bf16 MXU weights, f32 selectors / affine params.
    bw1 = _band_weights(params["conv1_w"], W).astype(jnp.bfloat16)
    bw2 = _band_weights(params["conv2_w"], W).astype(jnp.bfloat16)
    wid = jnp.kron(jnp.eye(W, dtype=jnp.float32),
                   params["id_w"].astype(jnp.float32)).astype(jnp.bfloat16)
    r1, t1 = _channel_selectors(Cin, W)
    r2, t2 = _channel_selectors(Cout, W)

    g1 = params["bn1_gamma"].reshape(1, Cin).astype(jnp.float32)
    b1 = params["bn1_beta"].reshape(1, Cin).astype(jnp.float32)
    g2 = params["bn2_gamma"].reshape(1, Cout).astype(jnp.float32)
    b2 = params["bn2_beta"].reshape(1, Cout).astype(jnp.float32)

    # Image-edge masks for the rolled H taps (zero where h==0 / h==H-1).
    h_idx = jnp.arange(NH, dtype=jnp.int32) % H
    mtop = (h_idx != 0).astype(jnp.float32).reshape(NH, 1)
    mbot = (h_idx != H - 1).astype(jnp.float32).reshape(NH, 1)

    flops = int(2 * NH * (3 * WCin * WCout + 3 * WCout * WCout + WCin * WCout)
                + 12 * NH * (WCin + WCout))
    bytes_accessed = int(4 * NH * (WCin + WCout)
                         + 2 * (3 * WCin * WCout + 3 * WCout * WCout
                                + WCin * WCout))
    cost = pl.CostEstimate(flops=flops, transcendentals=Cin + Cout,
                           bytes_accessed=bytes_accessed)

    out_flat = pl.pallas_call(
        functools.partial(_residual_kernel, N=N, H=H, W=W, Cin=Cin, Cout=Cout),
        out_shape=jax.ShapeDtypeStruct((NH, WCout), jnp.float32),
        in_specs=[_vmem_spec()] * 14,
        out_specs=_vmem_spec(),
        compiler_params=pltpu.CompilerParams(
            vmem_limit_bytes=32 * 1024 * 1024),
        cost_estimate=cost,
    )(x_flat, mtop, mbot, g1, b1, r1, t1, bw1, g2, b2, r2, t2, bw2, wid)

    return out_flat.reshape(N, H, W, Cout)


# ---------------------------------------------------------------------------
# NCHW wrapper (matches the PyTorch module's layout; transposes cost 2 extra
# HBM passes — prefer residual_forward_nhwc inside an NHWC model).
# ---------------------------------------------------------------------------
@jax.jit
def residual_forward(x_nchw, params):
    x_nhwc = jnp.transpose(x_nchw, (0, 2, 3, 1))
    out = residual_forward_nhwc(x_nhwc, params)
    return jnp.transpose(out, (0, 3, 1, 2))


# ---------------------------------------------------------------------------
# Pure-JAX reference (numerical check of the fused kernel + banded weights)
# ---------------------------------------------------------------------------
def residual_reference(x_nchw, params):
    x = jnp.transpose(x_nchw, (0, 2, 3, 1)).astype(jnp.float32)

    def bn_lrelu(x, g, b):
        m = jnp.mean(x, axis=(0, 1, 2), keepdims=True)
        v = jnp.mean((x - m) ** 2, axis=(0, 1, 2), keepdims=True)
        y = (x - m) * jax.lax.rsqrt(v + EPS) * g.reshape(1, 1, 1, -1) \
            + b.reshape(1, 1, 1, -1)
        return jnp.where(y >= 0, y, SLOPE * y)

    def conv(x, w, pad):
        return jax.lax.conv_general_dilated(
            x, w, (1, 1), [(pad, pad)] * 2,
            dimension_numbers=("NHWC", "HWIO", "NHWC"))

    h = bn_lrelu(x, params["bn1_gamma"], params["bn1_beta"])
    h = conv(h, params["conv1_w"], 1)
    h = bn_lrelu(h, params["bn2_gamma"], params["bn2_beta"])
    h = conv(h, params["conv2_w"], 1)
    cin, cout = params["id_w"].shape
    ident = conv(x, params["id_w"].reshape(1, 1, cin, cout), 0)
    return jnp.transpose(ident + h, (0, 3, 1, 2))


def make_params(key, cin, cout):
    k1, k2, k3 = jax.random.split(key, 3)
    return {
        # BatchNorm affine params (PyTorch init: weight=1, bias=0)
        "bn1_gamma": jnp.ones((1, cin), jnp.float32),
        "bn1_beta": jnp.zeros((1, cin), jnp.float32),
        "bn2_gamma": jnp.ones((1, cout), jnp.float32),
        "bn2_beta": jnp.zeros((1, cout), jnp.float32),
        # conv weights in HWIO layout (torch OIHW weights would be transposed
        # with w.transpose(2, 3, 1, 0) before use; these are synthetic)
        "conv1_w": 0.1 * jax.random.normal(k1, (3, 3, cin, cout), jnp.float32),
        "conv2_w": 0.1 * jax.random.normal(k2, (3, 3, cout, cout), jnp.float32),
        # 1x1 identity conv weight, flattened to (Cin, Cout)
        "id_w": 0.1 * jax.random.normal(k3, (cin, cout), jnp.float32),
    }


if __name__ == "__main__":
    key = jax.random.PRNGKey(0)
    kx, kp = jax.random.split(key)

    N, CIN, COUT, H, W = 2, 4, 8, 16, 16
    x = jax.random.normal(kx, (N, CIN, H, W), jnp.float32)   # NCHW, like PyTorch
    params = make_params(kp, CIN, COUT)

    out = jax.block_until_ready(residual_forward(x, params))
    assert out.shape == (N, COUT, H, W), out.shape

    ref = jax.block_until_ready(residual_reference(x, params))
    max_err = float(jnp.max(jnp.abs(out - ref)))
    # bf16 MXU operands (with f32 accumulation) perturb the result by ~1e-2;
    # tolerance widened accordingly per the performance-review guidance.
    if max_err > 5e-2:
        raise RuntimeError(f"Pallas output mismatch, max abs err = {max_err}")

    print("KERNEL_OK")
</pallas_src>

<mosaic_0001>
module attributes {stable_mosaic.version = 11 : i64} {
  func.func @_residual_kernel(%arg0: memref<32x64xf32, #tpu.memory_space<vmem>>, %arg1: memref<32x1xf32, #tpu.memory_space<vmem>>, %arg2: memref<32x1xf32, #tpu.memory_space<vmem>>, %arg3: memref<1x4xf32, #tpu.memory_space<vmem>>, %arg4: memref<1x4xf32, #tpu.memory_space<vmem>>, %arg5: memref<64x4xf32, #tpu.memory_space<vmem>>, %arg6: memref<4x64xf32, #tpu.memory_space<vmem>>, %arg7: memref<3x64x128xbf16, #tpu.memory_space<vmem>>, %arg8: memref<1x8xf32, #tpu.memory_space<vmem>>, %arg9: memref<1x8xf32, #tpu.memory_space<vmem>>, %arg10: memref<128x8xf32, #tpu.memory_space<vmem>>, %arg11: memref<8x128xf32, #tpu.memory_space<vmem>>, %arg12: memref<3x128x128xbf16, #tpu.memory_space<vmem>>, %arg13: memref<64x128xbf16, #tpu.memory_space<vmem>>, %arg14: memref<32x128xf32, #tpu.memory_space<vmem>>) attributes {dimension_semantics = [], scalar_prefetch = 0 : i64, scratch_operands = 0 : i64, tpu.core_type = #tpu.core_type<tc>} {
    %c0 = arith.constant 0 : index
    %c0_0 = arith.constant 0 : index
    %0 = vector.load %arg0[%c0, %c0_0] : memref<32x64xf32, #tpu.memory_space<vmem>>, vector<32x64xf32>
    %1 = arith.truncf %0 : vector<32x64xf32> to vector<32x64xbf16>
    %c0_1 = arith.constant 0 : index
    %c0_2 = arith.constant 0 : index
    %2 = vector.load %arg13[%c0_1, %c0_2] : memref<64x128xbf16, #tpu.memory_space<vmem>>, vector<64x128xbf16>
    %cst = arith.constant dense<0.000000e+00> : vector<32x128xf32>
    %3 = tpu.matmul %1, %2, %cst {dimension_numbers = #tpu.dot_dimension_numbers<[1], [0], [0], [1], [0, 0, 1, 1], [], []>} : vector<32x64xbf16>, vector<64x128xbf16>, vector<32x128xf32> -> vector<32x128xf32>
    %c0_3 = arith.constant 0 : index
    %c0_4 = arith.constant 0 : index
    %4 = vector.load %arg14[%c0_3, %c0_4] : memref<32x128xf32, #tpu.memory_space<vmem>>, vector<32x128xf32>
    tpu.vector_store %arg14[%c0_3, %c0_4], %3 {strides = array<i32>} : memref<32x128xf32, #tpu.memory_space<vmem>>, vector<32x128xf32>,
    %cst_5 = arith.constant dense<0.000000e+00> : vector<64xf32>
    %5 = vector.multi_reduction <add>, %0, %cst_5 [0] : vector<32x64xf32> to vector<64xf32>
    %6 = vector.shape_cast %5 : vector<64xf32> to vector<1x64xf32>
    %7 = arith.mulf %0, %0 : vector<32x64xf32>
    %cst_6 = arith.constant dense<0.000000e+00> : vector<64xf32>
    %8 = vector.multi_reduction <add>, %7, %cst_6 [0] : vector<32x64xf32> to vector<64xf32>
    %9 = vector.shape_cast %8 : vector<64xf32> to vector<1x64xf32>
    %c0_7 = arith.constant 0 : index
    %c0_8 = arith.constant 0 : index
    %10 = vector.load %arg5[%c0_7, %c0_8] : memref<64x4xf32, #tpu.memory_space<vmem>>, vector<64x4xf32>
    %cst_9 = arith.constant dense<0.000000e+00> : vector<1x4xf32>
    %11 = tpu.matmul %6, %10, %cst_9 {dimension_numbers = #tpu.dot_dimension_numbers<[1], [0], [0], [1], [0, 0, 1, 1], [], []>} : vector<1x64xf32>, vector<64x4xf32>, vector<1x4xf32> -> vector<1x4xf32>
    %c0_10 = arith.constant 0 : index
    %c0_11 = arith.constant 0 : index
    %12 = vector.load %arg5[%c0_10, %c0_11] : memref<64x4xf32, #tpu.memory_space<vmem>>, vector<64x4xf32>
    %cst_12 = arith.constant dense<0.000000e+00> : vector<1x4xf32>
    %13 = tpu.matmul %9, %12, %cst_12 {dimension_numbers = #tpu.dot_dimension_numbers<[1], [0], [0], [1], [0, 0, 1, 1], [], []>} : vector<1x64xf32>, vector<64x4xf32>, vector<1x4xf32> -> vector<1x4xf32>
    %cst_13 = arith.constant 5.120000e+02 : f32
    %14 = vector.broadcast %cst_13 : f32 to vector<1x4xf32>
    %15 = arith.divf %11, %14 : vector<1x4xf32>
    %cst_14 = arith.constant 5.120000e+02 : f32
    %16 = vector.broadcast %cst_14 : f32 to vector<1x4xf32>
    %17 = arith.divf %13, %16 : vector<1x4xf32>
    %18 = arith.mulf %15, %15 : vector<1x4xf32>
    %19 = arith.subf %17, %18 : vector<1x4xf32>
    %c0_15 = arith.constant 0 : index
    %c0_16 = arith.constant 0 : index
    %20 = vector.load %arg3[%c0_15, %c0_16] : memref<1x4xf32, #tpu.memory_space<vmem>>, vector<1x4xf32>
    %cst_17 = arith.constant 1.000000e-03 : f32
    %21 = vector.broadcast %cst_17 : f32 to vector<1x4xf32>
    %22 = arith.addf %19, %21 : vector<1x4xf32>
    %23 = math.rsqrt %22 : vector<1x4xf32>
    %24 = arith.mulf %20, %23 : vector<1x4xf32>
    %c0_18 = arith.constant 0 : index
    %c0_19 = arith.constant 0 : index
    %25 = vector.load %arg4[%c0_18, %c0_19] : memref<1x4xf32, #tpu.memory_space<vmem>>, vector<1x4xf32>
    %26 = arith.mulf %15, %24 : vector<1x4xf32>
    %27 = arith.subf %25, %26 : vector<1x4xf32>
    %c0_20 = arith.constant 0 : index
    %c0_21 = arith.constant 0 : index
    %28 = vector.load %arg6[%c0_20, %c0_21] : memref<4x64xf32, #tpu.memory_space<vmem>>, vector<4x64xf32>
    %cst_22 = arith.constant dense<0.000000e+00> : vector<1x64xf32>
    %29 = tpu.matmul %24, %28, %cst_22 {dimension_numbers = #tpu.dot_dimension_numbers<[1], [0], [0], [1], [0, 0, 1, 1], [], []>} : vector<1x4xf32>, vector<4x64xf32>, vector<1x64xf32> -> vector<1x64xf32>
    %c0_23 = arith.constant 0 : index
    %c0_24 = arith.constant 0 : index
    %30 = vector.load %arg6[%c0_23, %c0_24] : memref<4x64xf32, #tpu.memory_space<vmem>>, vector<4x64xf32>
    %cst_25 = arith.constant dense<0.000000e+00> : vector<1x64xf32>
    %31 = tpu.matmul %27, %30, %cst_25 {dimension_numbers = #tpu.dot_dimension_numbers<[1], [0], [0], [1], [0, 0, 1, 1], [], []>} : vector<1x4xf32>, vector<4x64xf32>, vector<1x64xf32> -> vector<1x64xf32>
    %32 = vector.broadcast %29 : vector<1x64xf32> to vector<32x64xf32>
    %33 = arith.mulf %0, %32 : vector<32x64xf32>
    %34 = vector.broadcast %31 : vector<1x64xf32> to vector<32x64xf32>
    %35 = arith.addf %33, %34 : vector<32x64xf32>
    %cst_26 = arith.constant 0.000000e+00 : f32
    %36 = vector.broadcast %cst_26 : f32 to vector<32x64xf32>
    %37 = arith.cmpf oge, %35, %36 : vector<32x64xf32>
    %cst_27 = arith.constant 1.000000e-01 : f32
    %38 = vector.broadcast %cst_27 : f32 to vector<32x64xf32>
    %39 = arith.mulf %38, %35 : vector<32x64xf32>
    %40 = arith.select %37, %35, %39 : vector<32x64xi1>, vector<32x64xf32>
    %c0_28 = arith.constant 0 : index
    %c0_29 = arith.constant 0 : index
    %41 = vector.load %arg1[%c0_28, %c0_29] : memref<32x1xf32, #tpu.memory_space<vmem>>, vector<32x1xf32>
    %c0_30 = arith.constant 0 : index
    %c0_31 = arith.constant 0 : index
    %42 = vector.load %arg2[%c0_30, %c0_31] : memref<32x1xf32, #tpu.memory_space<vmem>>, vector<32x1xf32>
    %c1_i32 = arith.constant 1 : i32
    %43 = tpu.dynamic_rotate %40 by %c1_i32 dim 0 : vector<32x64xf32>, i32 -> vector<32x64xf32>
    %44 = vector.broadcast %41 : vector<32x1xf32> to vector<32x64xf32>
    %45 = arith.mulf %43, %44 : vector<32x64xf32>
    %46 = arith.truncf %45 : vector<32x64xf32> to vector<32x64xbf16>
    %47 = arith.truncf %40 : vector<32x64xf32> to vector<32x64xbf16>
    %c31_i32 = arith.constant 31 : i32
    %48 = tpu.dynamic_rotate %40 by %c31_i32 dim 0 : vector<32x64xf32>, i32 -> vector<32x64xf32>
    %49 = vector.broadcast %42 : vector<32x1xf32> to vector<32x64xf32>
    %50 = arith.mulf %48, %49 : vector<32x64xf32>
    %51 = arith.truncf %50 : vector<32x64xf32> to vector<32x64xbf16>
    %c0_32 = arith.constant 0 : index
    %c0_33 = arith.constant 0 : index
    %c0_34 = arith.constant 0 : index
    %52 = vector.load %arg7[%c0_32, %c0_33, %c0_34] : memref<3x64x128xbf16, #tpu.memory_space<vmem>>, vector<1x64x128xbf16>
    %53 = vector.shape_cast %52 : vector<1x64x128xbf16> to vector<64x128xbf16>
    %cst_35 = arith.constant dense<0.000000e+00> : vector<32x128xf32>
    %54 = tpu.matmul %46, %53, %cst_35 {dimension_numbers = #tpu.dot_dimension_numbers<[1], [0], [0], [1], [0, 0, 1, 1], [], []>} : vector<32x64xbf16>, vector<64x128xbf16>, vector<32x128xf32> -> vector<32x128xf32>
    %c1 = arith.constant 1 : index
    %c0_36 = arith.constant 0 : index
    %c0_37 = arith.constant 0 : index
    %55 = vector.load %arg7[%c1, %c0_36, %c0_37] : memref<3x64x128xbf16, #tpu.memory_space<vmem>>, vector<1x64x128xbf16>
    %56 = vector.shape_cast %55 : vector<1x64x128xbf16> to vector<64x128xbf16>
    %cst_38 = arith.constant dense<0.000000e+00> : vector<32x128xf32>
    %57 = tpu.matmul %47, %56, %cst_38 {dimension_numbers = #tpu.dot_dimension_numbers<[1], [0], [0], [1], [0, 0, 1, 1], [], []>} : vector<32x64xbf16>, vector<64x128xbf16>, vector<32x128xf32> -> vector<32x128xf32>
    %58 = arith.addf %54, %57 : vector<32x128xf32>
    %c2 = arith.constant 2 : index
    %c0_39 = arith.constant 0 : index
    %c0_40 = arith.constant 0 : index
    %59 = vector.load %arg7[%c2, %c0_39, %c0_40] : memref<3x64x128xbf16, #tpu.memory_space<vmem>>, vector<1x64x128xbf16>
    %60 = vector.shape_cast %59 : vector<1x64x128xbf16> to vector<64x128xbf16>
    %cst_41 = arith.constant dense<0.000000e+00> : vector<32x128xf32>
    %61 = tpu.matmul %51, %60, %cst_41 {dimension_numbers = #tpu.dot_dimension_numbers<[1], [0], [0], [1], [0, 0, 1, 1], [], []>} : vector<32x64xbf16>, vector<64x128xbf16>, vector<32x128xf32> -> vector<32x128xf32>
    %62 = arith.addf %58, %61 : vector<32x128xf32>
    %cst_42 = arith.constant dense<0.000000e+00> : vector<128xf32>
    %63 = vector.multi_reduction <add>, %62, %cst_42 [0] : vector<32x128xf32> to vector<128xf32>
    %64 = vector.shape_cast %63 : vector<128xf32> to vector<1x128xf32>
    %65 = arith.mulf %62, %62 : vector<32x128xf32>
    %cst_43 = arith.constant dense<0.000000e+00> : vector<128xf32>
    %66 = vector.multi_reduction <add>, %65, %cst_43 [0] : vector<32x128xf32> to vector<128xf32>
    %67 = vector.shape_cast %66 : vector<128xf32> to vector<1x128xf32>
    %c0_44 = arith.constant 0 : index
    %c0_45 = arith.constant 0 : index
    %68 = vector.load %arg10[%c0_44, %c0_45] : memref<128x8xf32, #tpu.memory_space<vmem>>, vector<128x8xf32>
    %cst_46 = arith.constant dense<0.000000e+00> : vector<1x8xf32>
    %69 = tpu.matmul %64, %68, %cst_46 {dimension_numbers = #tpu.dot_dimension_numbers<[1], [0], [0], [1], [0, 0, 1, 1], [], []>} : vector<1x128xf32>, vector<128x8xf32>, vector<1x8xf32> -> vector<1x8xf32>
    %c0_47 = arith.constant 0 : index
    %c0_48 = arith.constant 0 : index
    %70 = vector.load %arg10[%c0_47, %c0_48] : memref<128x8xf32, #tpu.memory_space<vmem>>, vector<128x8xf32>
    %cst_49 = arith.constant dense<0.000000e+00> : vector<1x8xf32>
    %71 = tpu.matmul %67, %70, %cst_49 {dimension_numbers = #tpu.dot_dimension_numbers<[1], [0], [0], [1], [0, 0, 1, 1], [], []>} : vector<1x128xf32>, vector<128x8xf32>, vector<1x8xf32> -> vector<1x8xf32>
    %cst_50 = arith.constant 5.120000e+02 : f32
    %72 = vector.broadcast %cst_50 : f32 to vector<1x8xf32>
    %73 = arith.divf %69, %72 : vector<1x8xf32>
    %cst_51 = arith.constant 5.120000e+02 : f32
    %74 = vector.broadcast %cst_51 : f32 to vector<1x8xf32>
    %75 = arith.divf %71, %74 : vector<1x8xf32>
    %76 = arith.mulf %73, %73 : vector<1x8xf32>
    %77 = arith.subf %75, %76 : vector<1x8xf32>
    %c0_52 = arith.constant 0 : index
    %c0_53 = arith.constant 0 : index
    %78 = vector.load %arg8[%c0_52, %c0_53] : memref<1x8xf32, #tpu.memory_space<vmem>>, vector<1x8xf32>
    %cst_54 = arith.constant 1.000000e-03 : f32
    %79 = vector.broadcast %cst_54 : f32 to vector<1x8xf32>
    %80 = arith.addf %77, %79 : vector<1x8xf32>
    %81 = math.rsqrt %80 : vector<1x8xf32>
    %82 = arith.mulf %78, %81 : vector<1x8xf32>
    %c0_55 = arith.constant 0 : index
    %c0_56 = arith.constant 0 : index
    %83 = vector.load %arg9[%c0_55, %c0_56] : memref<1x8xf32, #tpu.memory_space<vmem>>, vector<1x8xf32>
    %84 = arith.mulf %73, %82 : vector<1x8xf32>
    %85 = arith.subf %83, %84 : vector<1x8xf32>
    %c0_57 = arith.constant 0 : index
    %c0_58 = arith.constant 0 : index
    %86 = vector.load %arg11[%c0_57, %c0_58] : memref<8x128xf32, #tpu.memory_space<vmem>>, vector<8x128xf32>
    %cst_59 = arith.constant dense<0.000000e+00> : vector<1x128xf32>
    %87 = tpu.matmul %82, %86, %cst_59 {dimension_numbers = #tpu.dot_dimension_numbers<[1], [0], [0], [1], [0, 0, 1, 1], [], []>} : vector<1x8xf32>, vector<8x128xf32>, vector<1x128xf32> -> vector<1x128xf32>
    %c0_60 = arith.constant 0 : index
    %c0_61 = arith.constant 0 : index
    %88 = vector.load %arg11[%c0_60, %c0_61] : memref<8x128xf32, #tpu.memory_space<vmem>>, vector<8x128xf32>
    %cst_62 = arith.constant dense<0.000000e+00> : vector<1x128xf32>
    %89 = tpu.matmul %85, %88, %cst_62 {dimension_numbers = #tpu.dot_dimension_numbers<[1], [0], [0], [1], [0, 0, 1, 1], [], []>} : vector<1x8xf32>, vector<8x128xf32>, vector<1x128xf32> -> vector<1x128xf32>
    %90 = vector.broadcast %87 : vector<1x128xf32> to vector<32x128xf32>
    %91 = arith.mulf %62, %90 : vector<32x128xf32>
    %92 = vector.broadcast %89 : vector<1x128xf32> to vector<32x128xf32>
    %93 = arith.addf %91, %92 : vector<32x128xf32>
    %cst_63 = arith.constant 0.000000e+00 : f32
    %94 = vector.broadcast %cst_63 : f32 to vector<32x128xf32>
    %95 = arith.cmpf oge, %93, %94 : vector<32x128xf32>
    %cst_64 = arith.constant 1.000000e-01 : f32
    %96 = vector.broadcast %cst_64 : f32 to vector<32x128xf32>
    %97 = arith.mulf %96, %93 : vector<32x128xf32>
    %98 = arith.select %95, %93, %97 : vector<32x128xi1>, vector<32x128xf32>
    %c1_i32_65 = arith.constant 1 : i32
    %99 = tpu.dynamic_rotate %98 by %c1_i32_65 dim 0 : vector<32x128xf32>, i32 -> vector<32x128xf32>
    %100 = vector.broadcast %41 : vector<32x1xf32> to vector<32x128xf32>
    %101 = arith.mulf %99, %100 : vector<32x128xf32>
    %102 = arith.truncf %101 : vector<32x128xf32> to vector<32x128xbf16>
    %103 = arith.truncf %98 : vector<32x128xf32> to vector<32x128xbf16>
    %c31_i32_66 = arith.constant 31 : i32
    %104 = tpu.dynamic_rotate %98 by %c31_i32_66 dim 0 : vector<32x128xf32>, i32 -> vector<32x128xf32>
    %105 = vector.broadcast %42 : vector<32x1xf32> to vector<32x128xf32>
    %106 = arith.mulf %104, %105 : vector<32x128xf32>
    %107 = arith.truncf %106 : vector<32x128xf32> to vector<32x128xbf16>
    %c0_67 = arith.constant 0 : index
    %c0_68 = arith.constant 0 : index
    %c0_69 = arith.constant 0 : index
    %108 = vector.load %arg12[%c0_67, %c0_68, %c0_69] : memref<3x128x128xbf16, #tpu.memory_space<vmem>>, vector<1x128x128xbf16>
    %109 = vector.shape_cast %108 : vector<1x128x128xbf16> to vector<128x128xbf16>
    %cst_70 = arith.constant dense<0.000000e+00> : vector<32x128xf32>
    %110 = tpu.matmul %102, %109, %cst_70 {dimension_numbers = #tpu.dot_dimension_numbers<[1], [0], [0], [1], [0, 0, 1, 1], [], []>} : vector<32x128xbf16>, vector<128x128xbf16>, vector<32x128xf32> -> vector<32x128xf32>
    %c1_71 = arith.constant 1 : index
    %c0_72 = arith.constant 0 : index
    %c0_73 = arith.constant 0 : index
    %111 = vector.load %arg12[%c1_71, %c0_72, %c0_73] : memref<3x128x128xbf16, #tpu.memory_space<vmem>>, vector<1x128x128xbf16>
    %112 = vector.shape_cast %111 : vector<1x128x128xbf16> to vector<128x128xbf16>
    %cst_74 = arith.constant dense<0.000000e+00> : vector<32x128xf32>
    %113 = tpu.matmul %103, %112, %cst_74 {dimension_numbers = #tpu.dot_dimension_numbers<[1], [0], [0], [1], [0, 0, 1, 1], [], []>} : vector<32x128xbf16>, vector<128x128xbf16>, vector<32x128xf32> -> vector<32x128xf32>
    %114 = arith.addf %110, %113 : vector<32x128xf32>
    %c2_75 = arith.constant 2 : index
    %c0_76 = arith.constant 0 : index
    %c0_77 = arith.constant 0 : index
    %115 = vector.load %arg12[%c2_75, %c0_76, %c0_77] : memref<3x128x128xbf16, #tpu.memory_space<vmem>>, vector<1x128x128xbf16>
    %116 = vector.shape_cast %115 : vector<1x128x128xbf16> to vector<128x128xbf16>
    %cst_78 = arith.constant dense<0.000000e+00> : vector<32x128xf32>
    %117 = tpu.matmul %107, %116, %cst_78 {dimension_numbers = #tpu.dot_dimension_numbers<[1], [0], [0], [1], [0, 0, 1, 1], [], []>} : vector<32x128xbf16>, vector<128x128xbf16>, vector<32x128xf32> -> vector<32x128xf32>
    %118 = arith.addf %114, %117 : vector<32x128xf32>
    %c0_79 = arith.constant 0 : index
    %c0_80 = arith.constant 0 : index
    %119 = vector.load %arg14[%c0_79, %c0_80] : memref<32x128xf32, #tpu.memory_space<vmem>>, vector<32x128xf32>
    %120 = arith.addf %119, %118 : vector<32x128xf32>
    %c0_81 = arith.constant 0 : index
    %c0_82 = arith.constant 0 : index
    %121 = vector.load %arg14[%c0_81, %c0_82] : memref<32x128xf32, #tpu.memory_space<vmem>>, vector<32x128xf32>
    tpu.vector_store %arg14[%c0_81, %c0_82], %120 {strides = array<i32>} : memref<32x128xf32, #tpu.memory_space<vmem>>, vector<32x128xf32>,
    return
  }
}

</mosaic_0001>

<llo_original>
// kernel: tile.19
$region0: #{tile.19}
  %s0 = inlined_call_operand.vmem [shape: f32[8,16,8], index: 0, kind: input, shape index: {}]
  %s1 = inlined_call_operand.vmem [shape: f32[8,128], index: 1, kind: output, shape index: {}]
  %s2 = smov 3
  %v3 = vld [vmem:[%s0] ss:$16 sm:%s2]
  %s4 = smov 12
  %v5 = vld [vmem:[%s0] ss:$16 sm:%s4]
  %vm6 = vcmask 1043458
  %v7 = vsel %vm6, %v5, %v3
  %s8 = smov 48
  %v9 = vld [vmem:[%s0] ss:$16 sm:%s8]
  %vm10 = vcmask 1045508
  %v11 = vsel %vm10, %v9, %v7
  %s12 = smov 192
  %v13 = vld [vmem:[%s0] ss:$16 sm:%s12]
  %vm14 = vcmask 1047558
  %v15 = vsel %vm14, %v13, %v11
  %vm16 = vcmask 64512
  %17 = vst.msk [vmem:[%s1] sm:$0xff] %vm16, %v15
  %s18 = scalar_lea.vmem %s0, 15
  %s19 = smov 3
  %v20 = vld [vmem:[%s18] ss:$16 sm:%s19]
  %s21 = scalar_lea.vmem %s0, 15
  %s22 = smov 12
  %v23 = vld [vmem:[%s21] ss:$16 sm:%s22]
  %vm24 = vcmask 1043458
  %v25 = vsel %vm24, %v23, %v20
  %s26 = scalar_lea.vmem %s0, 15
  %s27 = smov 48
  %v28 = vld [vmem:[%s26] ss:$16 sm:%s27]
  %vm29 = vcmask 1045508
  %v30 = vsel %vm29, %v28, %v25
  %s31 = scalar_lea.vmem %s0, 15
  %s32 = smov 192
  %v33 = vld [vmem:[%s31] ss:$16 sm:%s32]
  %vm34 = vcmask 1047558
  %v35 = vsel %vm34, %v33, %v30
  %36 = vrot.lane.b32.xlu0 %v35, 120
  %v37 = vpop.permute.xlu0 %36
  %vm38 = vcmask 1048512
  %39 = vst.msk [vmem:[%s1] sm:$0xff] %vm38, %v37
  %s40 = scalar_lea.vmem %s0, 14
  %s41 = smov 3
  %v42 = vld [vmem:[%s40] ss:$16 sm:%s41]
  %s43 = scalar_lea.vmem %s0, 14
  %s44 = smov 12
  %v45 = vld [vmem:[%s43] ss:$16 sm:%s44]
  %vm46 = vcmask 1043458
  %v47 = vsel %vm46, %v45, %v42
  %s48 = scalar_lea.vmem %s0, 14
  %s49 = smov 48
  %v50 = vld [vmem:[%s48] ss:$16 sm:%s49]
  %vm51 = vcmask 1045508
  %v52 = vsel %vm51, %v50, %v47
  %s53 = scalar_lea.vmem %s0, 14
  %s54 = smov 192
  %v55 = vld [vmem:[%s53] ss:$16 sm:%s54]
  %vm56 = vcmask 1047558
  %v57 = vsel %vm56, %v55, %v52
  %58 = vrot.lane.b32.xlu0 %v57, 112
  %v59 = vpop.permute.xlu0 %58
  %vm60 = vcmask 982912
  %61 = vst.msk [vmem:[%s1] sm:$0xff] %vm60, %v59
  %s62 = scalar_lea.vmem %s0, 13
  %s63 = smov 3
  %v64 = vld [vmem:[%s62] ss:$16 sm:%s63]
  %s65 = scalar_lea.vmem %s0, 13
  %s66 = smov 12
  %v67 = vld [vmem:[%s65] ss:$16 sm:%s66]
  %vm68 = vcmask 1043458
  %v69 = vsel %vm68, %v67, %v64
  %s70 = scalar_lea.vmem %s0, 13
  %s71 = smov 48
  %v72 = vld [vmem:[%s70] ss:$16 sm:%s71]
  %vm73 = vcmask 1045508
  %v74 = vsel %vm73, %v72, %v69
  %s75 = scalar_lea.vmem %s0, 13
  %s76 = smov 192
  %v77 = vld [vmem:[%s75] ss:$16 sm:%s76]
  %vm78 = vcmask 1047558
  %v79 = vsel %vm78, %v77, %v74
  %80 = vrot.lane.b32.xlu0 %v79, 104
  %v81 = vpop.permute.xlu0 %80
  %vm82 = vcmask 917312
  %83 = vst.msk [vmem:[%s1] sm:$0xff] %vm82, %v81
  %s84 = scalar_lea.vmem %s0, 12
  %s85 = smov 3
  %v86 = vld [vmem:[%s84] ss:$16 sm:%s85]
  %s87 = scalar_lea.vmem %s0, 12
  %s88 = smov 12
  %v89 = vld [vmem:[%s87] ss:$16 sm:%s88]
  %vm90 = vcmask 1043458
  %v91 = vsel %vm90, %v89, %v86
  %s92 = scalar_lea.vmem %s0, 12
  %s93 = smov 48
  %v94 = vld [vmem:[%s92] ss:$16 sm:%s93]
  %vm95 = vcmask 1045508
  %v96 = vsel %vm95, %v94, %v91
  %s97 = scalar_lea.vmem %s0, 12
  %s98 = smov 192
  %v99 = vld [vmem:[%s97] ss:$16 sm:%s98]
  %vm100 = vcmask 1047558
  %v101 = vsel %vm100, %v99, %v96
  %102 = vrot.lane.b32.xlu0 %v101, 96
  %v103 = vpop.permute.xlu0 %102
  %vm104 = vcmask 851712
  %105 = vst.msk [vmem:[%s1] sm:$0xff] %vm104, %v103
  %s106 = scalar_lea.vmem %s0, 11
  %s107 = smov 3
  %v108 = vld [vmem:[%s106] ss:$16 sm:%s107]
  %s109 = scalar_lea.vmem %s0, 11
  %s110 = smov 12
  %v111 = vld [vmem:[%s109] ss:$16 sm:%s110]
  %vm112 = vcmask 1043458
  %v113 = vsel %vm112, %v111, %v108
  %s114 = scalar_lea.vmem %s0, 11
  %s115 = smov 48
  %v116 = vld [vmem:[%s114] ss:$16 sm:%s115]
  %vm117 = vcmask 1045508
  %v118 = vsel %vm117, %v116, %v113
  %s119 = scalar_lea.vmem %s0, 11
  %s120 = smov 192
  %v121 = vld [vmem:[%s119] ss:$16 sm:%s120]
  %vm122 = vcmask 1047558
  %v123 = vsel %vm122, %v121, %v118
  %124 = vrot.lane.b32.xlu0 %v123, 88
  %v125 = vpop.permute.xlu0 %124
  %vm126 = vcmask 786112
  %127 = vst.msk [vmem:[%s1] sm:$0xff] %vm126, %v125
  %s128 = scalar_lea.vmem %s0, 10
  %s129 = smov 3
  %v130 = vld [vmem:[%s128] ss:$16 sm:%s129]
  %s131 = scalar_lea.vmem %s0, 10
  %s132 = smov 12
  %v133 = vld [vmem:[%s131] ss:$16 sm:%s132]
  %vm134 = vcmask 1043458
  %v135 = vsel %vm134, %v133, %v130
  %s136 = scalar_lea.vmem %s0, 10
  %s137 = smov 48
  %v138 = vld [vmem:[%s136] ss:$16 sm:%s137]
  %vm139 = vcmask 1045508
  %v140 = vsel %vm139, %v138, %v135
  %s141 = scalar_lea.vmem %s0, 10
  %s142 = smov 192
  %v143 = vld [vmem:[%s141] ss:$16 sm:%s142]
  %vm144 = vcmask 1047558
  %v145 = vsel %vm144, %v143, %v140
  %146 = vrot.lane.b32.xlu0 %v145, 80
  %v147 = vpop.permute.xlu0 %146
  %vm148 = vcmask 720512
  %149 = vst.msk [vmem:[%s1] sm:$0xff] %vm148, %v147
  %s150 = scalar_lea.vmem %s0, 9
  %s151 = smov 3
  %v152 = vld [vmem:[%s150] ss:$16 sm:%s151]
  %s153 = scalar_lea.vmem %s0, 9
  %s154 = smov 12
  %v155 = vld [vmem:[%s153] ss:$16 sm:%s154]
  %vm156 = vcmask 1043458
  %v157 = vsel %vm156, %v155, %v152
  %s158 = scalar_lea.vmem %s0, 9
  %s159 = smov 48
  %v160 = vld [vmem:[%s158] ss:$16 sm:%s159]
  %vm161 = vcmask 1045508
  %v162 = vsel %vm161, %v160, %v157
  %s163 = scalar_lea.vmem %s0, 9
  %s164 = smov 192
  %v165 = vld [vmem:[%s163] ss:$16 sm:%s164]
  %vm166 = vcmask 1047558
  %v167 = vsel %vm166, %v165, %v162
  %168 = vrot.lane.b32.xlu0 %v167, 72
  %v169 = vpop.permute.xlu0 %168
  %vm170 = vcmask 654912
  %171 = vst.msk [vmem:[%s1] sm:$0xff] %vm170, %v169
  %s172 = scalar_lea.vmem %s0, 8
  %s173 = smov 3
  %v174 = vld [vmem:[%s172] ss:$16 sm:%s173]
  %s175 = scalar_lea.vmem %s0, 8
  %s176 = smov 12
  %v177 = vld [vmem:[%s175] ss:$16 sm:%s176]
  %vm178 = vcmask 1043458
  %v179 = vsel %vm178, %v177, %v174
  %s180 = scalar_lea.vmem %s0, 8
  %s181 = smov 48
  %v182 = vld [vmem:[%s180] ss:$16 sm:%s181]
  %vm183 = vcmask 1045508
  %v184 = vsel %vm183, %v182, %v179
  %s185 = scalar_lea.vmem %s0, 8
  %s186 = smov 192
  %v187 = vld [vmem:[%s185] ss:$16 sm:%s186]
  %vm188 = vcmask 1047558
  %v189 = vsel %vm188, %v187, %v184
  %190 = vrot.lane.b32.xlu0 %v189, 64
  %v191 = vpop.permute.xlu0 %190
  %vm192 = vcmask 589312
  %193 = vst.msk [vmem:[%s1] sm:$0xff] %vm192, %v191
  %s194 = scalar_lea.vmem %s0, 7
  %s195 = smov 3
  %v196 = vld [vmem:[%s194] ss:$16 sm:%s195]
  %s197 = scalar_lea.vmem %s0, 7
  %s198 = smov 12
  %v199 = vld [vmem:[%s197] ss:$16 sm:%s198]
  %vm200 = vcmask 1043458
  %v201 = vsel %vm200, %v199, %v196
  %s202 = scalar_lea.vmem %s0, 7
  %s203 = smov 48
  %v204 = vld [vmem:[%s202] ss:$16 sm:%s203]
  %vm205 = vcmask 1045508
  %v206 = vsel %vm205, %v204, %v201
  %s207 = scalar_lea.vmem %s0, 7
  %s208 = smov 192
  %v209 = vld [vmem:[%s207] ss:$16 sm:%s208]
  %vm210 = vcmask 1047558
  %v211 = vsel %vm210, %v209, %v206
  %212 = vrot.lane.b32.xlu0 %v211, 56
  %v213 = vpop.permute.xlu0 %212
  %vm214 = vcmask 523712
  %215 = vst.msk [vmem:[%s1] sm:$0xff] %vm214, %v213
  %s216 = scalar_lea.vmem %s0, 6
  %s217 = smov 3
  %v218 = vld [vmem:[%s216] ss:$16 sm:%s217]
  %s219 = scalar_lea.vmem %s0, 6
  %s220 = smov 12
  %v221 = vld [vmem:[%s219] ss:$16 sm:%s220]
  %vm222 = vcmask 1043458
  %v223 = vsel %vm222, %v221, %v218
  %s224 = scalar_lea.vmem %s0, 6
  %s225 = smov 48
  %v226 = vld [vmem:[%s224] ss:$16 sm:%s225]
  %vm227 = vcmask 1045508
  %v228 = vsel %vm227, %v226, %v223
  %s229 = scalar_lea.vmem %s0, 6
  %s230 = smov 192
  %v231 = vld [vmem:[%s229] ss:$16 sm:%s230]
  %vm232 = vcmask 1047558
  %v233 = vsel %vm232, %v231, %v228
  %234 = vrot.lane.b32.xlu0 %v233, 48
  %v235 = vpop.permute.xlu0 %234
  %vm236 = vcmask 458112
  %237 = vst.msk [vmem:[%s1] sm:$0xff] %vm236, %v235
  %s238 = scalar_lea.vmem %s0, 5
  %s239 = smov 3
  %v240 = vld [vmem:[%s238] ss:$16 sm:%s239]
  %s241 = scalar_lea.vmem %s0, 5
  %s242 = smov 12
  %v243 = vld [vmem:[%s241] ss:$16 sm:%s242]
  %vm244 = vcmask 1043458
  %v245 = vsel %vm244, %v243, %v240
  %s246 = scalar_lea.vmem %s0, 5
  %s247 = smov 48
  %v248 = vld [vmem:[%s246] ss:$16 sm:%s247]
  %vm249 = vcmask 1045508
  %v250 = vsel %vm249, %v248, %v245
  %s251 = scalar_lea.vmem %s0, 5
  %s252 = smov 192
  %v253 = vld [vmem:[%s251] ss:$16 sm:%s252]
  %vm254 = vcmask 1047558
  %v255 = vsel %vm254, %v253, %v250
  %256 = vrot.lane.b32.xlu0 %v255, 40
  %v257 = vpop.permute.xlu0 %256
  %vm258 = vcmask 392512
  %259 = vst.msk [vmem:[%s1] sm:$0xff] %vm258, %v257
  %s260 = scalar_lea.vmem %s0, 4
  %s261 = smov 3
  %v262 = vld [vmem:[%s260] ss:$16 sm:%s261]
  %s263 = scalar_lea.vmem %s0, 4
  %s264 = smov 12
  %v265 = vld [vmem:[%s263] ss:$16 sm:%s264]
  %vm266 = vcmask 1043458
  %v267 = vsel %vm266, %v265, %v262
  %s268 = scalar_lea.vmem %s0, 4
  %s269 = smov 48
  %v270 = vld [vmem:[%s268] ss:$16 sm:%s269]
  %vm271 = vcmask 1045508
  %v272 = vsel %vm271, %v270, %v267
  %s273 = scalar_lea.vmem %s0, 4
  %s274 = smov 192
  %v275 = vld [vmem:[%s273] ss:$16 sm:%s274]
  %vm276 = vcmask 1047558
  %v277 = vsel %vm276, %v275, %v272
  %278 = vrot.lane.b32.xlu0 %v277, 32
  %v279 = vpop.permute.xlu0 %278
  %vm280 = vcmask 326912
  %281 = vst.msk [vmem:[%s1] sm:$0xff] %vm280, %v279
  %s282 = scalar_lea.vmem %s0, 3
  %s283 = smov 3
  %v284 = vld [vmem:[%s282] ss:$16 sm:%s283]
  %s285 = scalar_lea.vmem %s0, 3
  %s286 = smov 12
  %v287 = vld [vmem:[%s285] ss:$16 sm:%s286]
  %vm288 = vcmask 1043458
  %v289 = vsel %vm288, %v287, %v284
  %s290 = scalar_lea.vmem %s0, 3
  %s291 = smov 48
  %v292 = vld [vmem:[%s290] ss:$16 sm:%s291]
  %vm293 = vcmask 1045508
  %v294 = vsel %vm293, %v292, %v289
  %s295 = scalar_lea.vmem %s0, 3
  %s296 = smov 192
  %v297 = vld [vmem:[%s295] ss:$16 sm:%s296]
  %vm298 = vcmask 1047558
  %v299 = vsel %vm298, %v297, %v294
  %300 = vrot.lane.b32.xlu0 %v299, 24
  %v301 = vpop.permute.xlu0 %300
  %vm302 = vcmask 261312
  %303 = vst.msk [vmem:[%s1] sm:$0xff] %vm302, %v301
  %s304 = scalar_lea.vmem %s0, 2
  %s305 = smov 3
  %v306 = vld [vmem:[%s304] ss:$16 sm:%s305]
  %s307 = scalar_lea.vmem %s0, 2
  %s308 = smov 12
  %v309 = vld [vmem:[%s307] ss:$16 sm:%s308]
  %vm310 = vcmask 1043458
  %v311 = vsel %vm310, %v309, %v306
  %s312 = scalar_lea.vmem %s0, 2
  %s313 = smov 48
  %v314 = vld [vmem:[%s312] ss:$16 sm:%s313]
  %vm315 = vcmask 1045508
  %v316 = vsel %vm315, %v314, %v311
  %s317 = scalar_lea.vmem %s0, 2
  %s318 = smov 192
  %v319 = vld [vmem:[%s317] ss:$16 sm:%s318]
  %vm320 = vcmask 1047558
  %v321 = vsel %vm320, %v319, %v316
  %322 = vrot.lane.b32.xlu0 %v321, 16
  %v323 = vpop.permute.xlu0 %322
  %vm324 = vcmask 195712
  %325 = vst.msk [vmem:[%s1] sm:$0xff] %vm324, %v323
  %s326 = scalar_lea.vmem %s0, 1
  %s327 = smov 3
  %v328 = vld [vmem:[%s326] ss:$16 sm:%s327]
  %s329 = scalar_lea.vmem %s0, 1
  %s330 = smov 12
  %v331 = vld [vmem:[%s329] ss:$16 sm:%s330]
  %vm332 = vcmask 1043458
  %v333 = vsel %vm332, %v331, %v328
  %s334 = scalar_lea.vmem %s0, 1
  %s335 = smov 48
  %v336 = vld [vmem:[%s334] ss:$16 sm:%s335]
  %vm337 = vcmask 1045508
  %v338 = vsel %vm337, %v336, %v333
  %s339 = scalar_lea.vmem %s0, 1
  %s340 = smov 192
  %v341 = vld [vmem:[%s339] ss:$16 sm:%s340]
  %vm342 = vcmask 1047558
  %v343 = vsel %vm342, %v341, %v338
  %344 = vrot.lane.b32.xlu0 %v343, 8
  %v345 = vpop.permute.xlu0 %344
  %vm346 = vcmask 130112
  %347 = vst.msk [vmem:[%s1] sm:$0xff] %vm346, %v345

// kernel: tile.14
$region0: #{tile.14}
  %s0 = inlined_call_operand.vmem [shape: f32[4,16,4], index: 0, kind: input, shape index: {}]
  %s1 = inlined_call_operand.vmem [shape: f32[4,64], index: 1, kind: output, shape index: {}]
  $region1: #{tile.14} parent=0
    #allocation0 [shape = 'u8[4096]{0}', space=vmem, size = 0x1000, scoped, tag = 'scoped mem for output reshape']
    %s2 = smov 3
    %v3 = vld [vmem:[%s0] ss:$16 sm:%s2]
    %s4 = smov 12
    %v5 = vld [vmem:[%s0] ss:$16 sm:%s4]
    %vm6 = vcmask 1043458
    %v7 = vsel %vm6, %v5, %v3
    %vm8 = vcmask 31744
    %9 = vst.msk [vmem:[#allocation0] sm:$0xf] %vm8, %v7
    %s10 = scalar_lea.vmem %s0, 15
    %s11 = smov 3
    %v12 = vld [vmem:[%s10] ss:$16 sm:%s11]
    %s13 = scalar_lea.vmem %s0, 15
    %s14 = smov 12
    %v15 = vld [vmem:[%s13] ss:$16 sm:%s14]
    %vm16 = vcmask 1043458
    %v17 = vsel %vm16, %v15, %v12
    %18 = vrot.lane.b32.xlu0 %v17, 60
    %v19 = vpop.permute.xlu0 %18
    %vm20 = vcmask 523744
    %21 = vst.msk [vmem:[#allocation0] sm:$0xf] %vm20, %v19
    %s22 = scalar_lea.vmem %s0, 14
    %s23 = smov 3
    %v24 = vld [vmem:[%s22] ss:$16 sm:%s23]
    %s25 = scalar_lea.vmem %s0, 14
    %s26 = smov 12
    %v27 = vld [vmem:[%s25] ss:$16 sm:%s26]
    %vm28 = vcmask 1043458
    %v29 = vsel %vm28, %v27, %v24
    %30 = vrot.lane.b32.xlu0 %v29, 56
    %v31 = vpop.permute.xlu0 %30
    %vm32 = vcmask 490944
    %33 = vst.msk [vmem:[#allocation0] sm:$0xf] %vm32, %v31
    %s34 = scalar_lea.vmem %s0, 13
    %s35 = smov 3
    %v36 = vld [vmem:[%s34] ss:$16 sm:%s35]
    %s37 = scalar_lea.vmem %s0, 13
    %s38 = smov 12
    %v39 = vld [vmem:[%s37] ss:$16 sm:%s38]
    %vm40 = vcmask 1043458
    %v41 = vsel %vm40, %v39, %v36
    %42 = vrot.lane.b32.xlu0 %v41, 52
    %v43 = vpop.permute.xlu0 %42
    %vm44 = vcmask 458144
    %45 = vst.msk [vmem:[#allocation0] sm:$0xf] %vm44, %v43
    %s46 = scalar_lea.vmem %s0, 12
    %s47 = smov 3
    %v48 = vld [vmem:[%s46] ss:$16 sm:%s47]
    %s49 = scalar_lea.vmem %s0, 12
    %s50 = smov 12
    %v51 = vld [vmem:[%s49] ss:$16 sm:%s50]
    %vm52 = vcmask 1043458
    %v53 = vsel %vm52, %v51, %v48
    %54 = vrot.lane.b32.xlu0 %v53, 48
    %v55 = vpop.permute.xlu0 %54
    %vm56 = vcmask 425344
    %57 = vst.msk [vmem:[#allocation0] sm:$0xf] %vm56, %v55
    %s58 = scalar_lea.vmem %s0, 11
    %s59 = smov 3
    %v60 = vld [vmem:[%s58] ss:$16 sm:%s59]
    %s61 = scalar_lea.vmem %s0, 11
    %s62 = smov 12
    %v63 = vld [vmem:[%s61] ss:$16 sm:%s62]
    %vm64 = vcmask 1043458
    %v65 = vsel %vm64, %v63, %v60
    %66 = vrot.lane.b32.xlu0 %v65, 44
    %v67 = vpop.permute.xlu0 %66
    %vm68 = vcmask 392544
    %69 = vst.msk [vmem:[#allocation0] sm:$0xf] %vm68, %v67
    %s70 = scalar_lea.vmem %s0, 10
    %s71 = smov 3
    %v72 = vld [vmem:[%s70] ss:$16 sm:%s71]
    %s73 = scalar_lea.vmem %s0, 10
    %s74 = smov 12
    %v75 = vld [vmem:[%s73] ss:$16 sm:%s74]
    %vm76 = vcmask 1043458
    %v77 = vsel %vm76, %v75, %v72
    %78 = vrot.lane.b32.xlu0 %v77, 40
    %v79 = vpop.permute.xlu0 %78
    %vm80 = vcmask 359744
    %81 = vst.msk [vmem:[#allocation0] sm:$0xf] %vm80, %v79
    %s82 = scalar_lea.vmem %s0, 9
    %s83 = smov 3
    %v84 = vld [vmem:[%s82] ss:$16 sm:%s83]
    %s85 = scalar_lea.vmem %s0, 9
    %s86 = smov 12
    %v87 = vld [vmem:[%s85] ss:$16 sm:%s86]
    %vm88 = vcmask 1043458
    %v89 = vsel %vm88, %v87, %v84
    %90 = vrot.lane.b32.xlu0 %v89, 36
    %v91 = vpop.permute.xlu0 %90
    %vm92 = vcmask 326944
    %93 = vst.msk [vmem:[#allocation0] sm:$0xf] %vm92, %v91
    %s94 = scalar_lea.vmem %s0, 8
    %s95 = smov 3
    %v96 = vld [vmem:[%s94] ss:$16 sm:%s95]
    %s97 = scalar_lea.vmem %s0, 8
    %s98 = smov 12
    %v99 = vld [vmem:[%s97] ss:$16 sm:%s98]
    %vm100 = vcmask 1043458
    %v101 = vsel %vm100, %v99, %v96
    %102 = vrot.lane.b32.xlu0 %v101, 32
    %v103 = vpop.permute.xlu0 %102
    %vm104 = vcmask 294144
    %105 = vst.msk [vmem:[#allocation0] sm:$0xf] %vm104, %v103
    %s106 = scalar_lea.vmem %s0, 7
    %s107 = smov 3
    %v108 = vld [vmem:[%s106] ss:$16 sm:%s107]
    %s109 = scalar_lea.vmem %s0, 7
    %s110 = smov 12
    %v111 = vld [vmem:[%s109] ss:$16 sm:%s110]
    %vm112 = vcmask 1043458
    %v113 = vsel %vm112, %v111, %v108
    %114 = vrot.lane.b32.xlu0 %v113, 28
    %v115 = vpop.permute.xlu0 %114
    %vm116 = vcmask 261344
    %117 = vst.msk [vmem:[#allocation0] sm:$0xf] %vm116, %v115
    %s118 = scalar_lea.vmem %s0, 6
    %s119 = smov 3
    %v120 = vld [vmem:[%s118] ss:$16 sm:%s119]
    %s121 = scalar_lea.vmem %s0, 6
    %s122 = smov 12
    %v123 = vld [vmem:[%s121] ss:$16 sm:%s122]
    %vm124 = vcmask 1043458
    %v125 = vsel %vm124, %v123, %v120
    %126 = vrot.lane.b32.xlu0 %v125, 24
    %v127 = vpop.permute.xlu0 %126
    %vm128 = vcmask 228544
    %129 = vst.msk [vmem:[#allocation0] sm:$0xf] %vm128, %v127
    %s130 = scalar_lea.vmem %s0, 5
    %s131 = smov 3
    %v132 = vld [vmem:[%s130] ss:$16 sm:%s131]
    %s133 = scalar_lea.vmem %s0, 5
    %s134 = smov 12
    %v135 = vld [vmem:[%s133] ss:$16 sm:%s134]
    %vm136 = vcmask 1043458
    %v137 = vsel %vm136, %v135, %v132
    %138 = vrot.lane.b32.xlu0 %v137, 20
    %v139 = vpop.permute.xlu0 %138
    %vm140 = vcmask 195744
    %141 = vst.msk [vmem:[#allocation0] sm:$0xf] %vm140, %v139
    %s142 = scalar_lea.vmem %s0, 4
    %s143 = smov 3
    %v144 = vld [vmem:[%s142] ss:$16 sm:%s143]
    %s145 = scalar_lea.vmem %s0, 4
    %s146 = smov 12
    %v147 = vld [vmem:[%s145] ss:$16 sm:%s146]
    %vm148 = vcmask 1043458
    %v149 = vsel %vm148, %v147, %v144
    %150 = vrot.lane.b32.xlu0 %v149, 16
    %v151 = vpop.permute.xlu0 %150
    %vm152 = vcmask 162944
    %153 = vst.msk [vmem:[#allocation0] sm:$0xf] %vm152, %v151
    %s154 = scalar_lea.vmem %s0, 3
    %s155 = smov 3
    %v156 = vld [vmem:[%s154] ss:$16 sm:%s155]
    %s157 = scalar_lea.vmem %s0, 3
    %s158 = smov 12
    %v159 = vld [vmem:[%s157] ss:$16 sm:%s158]
    %vm160 = vcmask 1043458
    %v161 = vsel %vm160, %v159, %v156
    %162 = vrot.lane.b32.xlu0 %v161, 12
    %v163 = vpop.permute.xlu0 %162
    %vm164 = vcmask 130144
    %165 = vst.msk [vmem:[#allocation0] sm:$0xf] %vm164, %v163
    %s166 = scalar_lea.vmem %s0, 2
    %s167 = smov 3
    %v168 = vld [vmem:[%s166] ss:$16 sm:%s167]
    %s169 = scalar_lea.vmem %s0, 2
    %s170 = smov 12
    %v171 = vld [vmem:[%s169] ss:$16 sm:%s170]
    %vm172 = vcmask 1043458
    %v173 = vsel %vm172, %v171, %v168
    %174 = vrot.lane.b32.xlu0 %v173, 8
    %v175 = vpop.permute.xlu0 %174
    %vm176 = vcmask 97344
    %177 = vst.msk [vmem:[#allocation0] sm:$0xf] %vm176, %v175
    %s178 = scalar_lea.vmem %s0, 1
    %s179 = smov 3
    %v180 = vld [vmem:[%s178] ss:$16 sm:%s179]
    %s181 = scalar_lea.vmem %s0, 1
    %s182 = smov 12
    %v183 = vld [vmem:[%s181] ss:$16 sm:%s182]
    %vm184 = vcmask 1043458
    %v185 = vsel %vm184, %v183, %v180
    %186 = vrot.lane.b32.xlu0 %v185, 4
    %v187 = vpop.permute.xlu0 %186
    %vm188 = vcmask 64544
    %189 = vst.msk [vmem:[#allocation0] sm:$0xf] %vm188, %v187
    %s191 = ssub.s32 16, 1
    %v192 = vld [vmem:[#allocation0] sm:%s191]
    %s194 = ssub.s32 16, 1
    %195 = vst [vmem:[%s1] sm:%s194] %v192

// kernel: residual_forward_nhwc.1
$region0: #{residual_forward_nhwc.1}
  #allocation0 [shape = 'u32[]', space=smem, size = 0x4, offset = 0x4, fixed_abs, tag = 'smem constant byte address 0x4 - core index']
  #allocation1 [shape = 'u32[72,128]{1,0:T(1,128)}', space=vmem, size = 0x9000, scoped, tag = 'internal scratch']
  %s0 = inlined_call_operand.vmem [shape: f32[32,64], index: 0, kind: input, shape index: {}]
  %s1 = inlined_call_operand.vmem [shape: f32[32,1], index: 1, kind: input, shape index: {}]
  %s2 = inlined_call_operand.vmem [shape: f32[32,1], index: 2, kind: input, shape index: {}]
  %s3 = inlined_call_operand.vmem [shape: f32[1,4], index: 3, kind: input, shape index: {}]
  %s4 = inlined_call_operand.vmem [shape: f32[1,4], index: 4, kind: input, shape index: {}]
  %s5 = inlined_call_operand.vmem [shape: f32[64,4], index: 5, kind: input, shape index: {}]
  %s6 = inlined_call_operand.vmem [shape: f32[4,64], index: 6, kind: input, shape index: {}]
  %s7 = inlined_call_operand.vmem [shape: bf16[3,64,128], index: 7, kind: input, shape index: {}]
  %s8 = inlined_call_operand.vmem [shape: f32[1,8], index: 8, kind: input, shape index: {}]
  %s9 = inlined_call_operand.vmem [shape: f32[1,8], index: 9, kind: input, shape index: {}]
  %s10 = inlined_call_operand.vmem [shape: f32[128,8], index: 10, kind: input, shape index: {}]
  %s11 = inlined_call_operand.vmem [shape: f32[8,128], index: 11, kind: input, shape index: {}]
  %s12 = inlined_call_operand.vmem [shape: bf16[3,128,128], index: 12, kind: input, shape index: {}]
  %s13 = inlined_call_operand.vmem [shape: bf16[64,128], index: 13, kind: input, shape index: {}]
  %s14 = inlined_call_operand.vmem [shape: f32[32,128], index: 14, kind: output, shape index: {}]
  %s15 = sld [smem:[#allocation0]]
  $region66: #{residual_forward_nhwc.1} parent=0
    _
  %s17 = ssub.s32 1, %s15
  %s18 = scalar_select 0, %s17, %s15
  // Predicated region
  $region2: #{residual_forward_nhwc.1} parent=0 // pred_check
    _
  $region3: #{residual_forward_nhwc.1} parent=0 // pred_check_branch
    %20 = sbr.rel (0) target = $region5
  $region4: #{residual_forward_nhwc.1} parent=0 // pred_region
    _
  $region5: #{residual_forward_nhwc.1} parent=0 // pred_fallthru
    _
  // Predicated region
  $region6: #{residual_forward_nhwc.1} parent=0 // pred_check
    _
  $region7: #{residual_forward_nhwc.1} parent=0 // pred_check_branch
    %22 = sbr.rel (0) target = $region9
  $region8: #{residual_forward_nhwc.1} parent=0 // pred_region
    _
  $region9: #{residual_forward_nhwc.1} parent=0 // pred_fallthru
    _
  // Predicated region
  $region10: #{residual_forward_nhwc.1} parent=0 // pred_check
    _
  $region11: #{residual_forward_nhwc.1} parent=0 // pred_check_branch
    %24 = sbr.rel (0) target = $region13
  $region12: #{residual_forward_nhwc.1} parent=0 // pred_region
    _
  $region13: #{residual_forward_nhwc.1} parent=0 // pred_fallthru
    _
  // Predicated region
  $region14: #{residual_forward_nhwc.1} parent=0 // pred_check
    _
  $region15: #{residual_forward_nhwc.1} parent=0 // pred_check_branch
    %26 = sbr.rel (0) target = $region17
  $region16: #{residual_forward_nhwc.1} parent=0 // pred_region
    _
  $region17: #{residual_forward_nhwc.1} parent=0 // pred_fallthru
    _
  // Predicated region
  $region18: #{residual_forward_nhwc.1} parent=0 // pred_check
    _
  $region19: #{residual_forward_nhwc.1} parent=0 // pred_check_branch
    %28 = sbr.rel (0) target = $region21
  $region20: #{residual_forward_nhwc.1} parent=0 // pred_region
    _
  $region21: #{residual_forward_nhwc.1} parent=0 // pred_fallthru
    _
  // Predicated region
  $region22: #{residual_forward_nhwc.1} parent=0 // pred_check
    _
  $region23: #{residual_forward_nhwc.1} parent=0 // pred_check_branch
    %30 = sbr.rel (0) target = $region25
  $region24: #{residual_forward_nhwc.1} parent=0 // pred_region
    _
  $region25: #{residual_forward_nhwc.1} parent=0 // pred_fallthru
    _
  // Predicated region
  $region26: #{residual_forward_nhwc.1} parent=0 // pred_check
    _
  $region27: #{residual_forward_nhwc.1} parent=0 // pred_check_branch
    %32 = sbr.rel (0) target = $region29
  $region28: #{residual_forward_nhwc.1} parent=0 // pred_region
    _
  $region29: #{residual_forward_nhwc.1} parent=0 // pred_fallthru
    _
  // Predicated region
  $region30: #{residual_forward_nhwc.1} parent=0 // pred_check
    _
  $region31: #{residual_forward_nhwc.1} parent=0 // pred_check_branch
    %34 = sbr.rel (0) target = $region33
  $region32: #{residual_forward_nhwc.1} parent=0 // pred_region
    _
  $region33: #{residual_forward_nhwc.1} parent=0 // pred_fallthru
    _
  // Predicated region
  $region34: #{residual_forward_nhwc.1} parent=0 // pred_check
    _
  $region35: #{residual_forward_nhwc.1} parent=0 // pred_check_branch
    %36 = sbr.rel (0) target = $region37
  $region36: #{residual_forward_nhwc.1} parent=0 // pred_region
    _
  $region37: #{residual_forward_nhwc.1} parent=0 // pred_fallthru
    _
  // Predicated region
  $region38: #{residual_forward_nhwc.1} parent=0 // pred_check
    _
  $region39: #{residual_forward_nhwc.1} parent=0 // pred_check_branch
    %38 = sbr.rel (0) target = $region41
  $region40: #{residual_forward_nhwc.1} parent=0 // pred_region
    _
  $region41: #{residual_forward_nhwc.1} parent=0 // pred_fallthru
    _
  // Predicated region
  $region42: #{residual_forward_nhwc.1} parent=0 // pred_check
    _
  $region43: #{residual_forward_nhwc.1} parent=0 // pred_check_branch
    %40 = sbr.rel (0) target = $region45
  $region44: #{residual_forward_nhwc.1} parent=0 // pred_region
    _
  $region45: #{residual_forward_nhwc.1} parent=0 // pred_fallthru
    _
  // Predicated region
  $region46: #{residual_forward_nhwc.1} parent=0 // pred_check
    _
  $region47: #{residual_forward_nhwc.1} parent=0 // pred_check_branch
    %42 = sbr.rel (0) target = $region49
  $region48: #{residual_forward_nhwc.1} parent=0 // pred_region
    _
  $region49: #{residual_forward_nhwc.1} parent=0 // pred_fallthru
    _
  // Predicated region
  $region50: #{residual_forward_nhwc.1} parent=0 // pred_check
    _
  $region51: #{residual_forward_nhwc.1} parent=0 // pred_check_branch
    %44 = sbr.rel (0) target = $region53
  $region52: #{residual_forward_nhwc.1} parent=0 // pred_region
    _
  $region53: #{residual_forward_nhwc.1} parent=0 // pred_fallthru
    _
  // Predicated region
  $region54: #{residual_forward_nhwc.1} parent=0 // pred_check
    _
  $region55: #{residual_forward_nhwc.1} parent=0 // pred_check_branch
    %46 = sbr.rel (0) target = $region57
  $region56: #{residual_forward_nhwc.1} parent=0 // pred_region
    _
  $region57: #{residual_forward_nhwc.1} parent=0 // pred_fallthru
    _
  %v48 = vld [vmem:[%s0] sm:$0xff]
  %v49 = vld [vmem:[%s0 + $0x8] sm:$0xff]
  %v50 = vld [vmem:[%s0 + $0x10] sm:$0xff]
  %v51 = vld [vmem:[%s0 + $0x18] sm:$0xff]
  %v52 = vpack.c.bf16 %v49, %v48
  %v53 = vpack.c.bf16 %v51, %v50
  %v54 = vld [vmem:[%s13] sm:$0xf]
  %v55 = vld [vmem:[%s13 + $0x4] sm:$0xf]
  %v56 = vld [vmem:[%s13 + $0x8] sm:$0xf]
  %v57 = vld [vmem:[%s13 + $0xc] sm:$0xf]
  %v58 = vld [vmem:[%s13 + $0x10] sm:$0xf]
  %v59 = vld [vmem:[%s13 + $0x14] sm:$0xf]
  %v60 = vld [vmem:[%s13 + $0x18] sm:$0xf]
  %v61 = vld [vmem:[%s13 + $0x1c] sm:$0xf]
  %v70 = vunpack.c.l.b16 %v54
  %v71 = vunpack.c.l.b16 %v55
  %v72 = vunpack.c.l.b16 %v56
  %v73 = vunpack.c.l.b16 %v57
  %v74 = vunpack.c.l.b16 %v58
  %v75 = vunpack.c.l.b16 %v59
  %v76 = vunpack.c.l.b16 %v60
  %v77 = vunpack.c.l.b16 %v61
  %v78 = vpack.c.b16 %v71, %v70
  %v79 = vpack.c.b16 %v73, %v72
  %v80 = vpack.c.b16 %v75, %v74
  %v81 = vpack.c.b16 %v77, %v76
  %vm86 = vcmask 523264
  %v88 = vsel %vm86, %v52, 0
  %v91 = vsel %vm86, %v53, 0
  %93 = vmatpush.bf16.msra.mxu0 0
  %94 = vmatpush.bf16.msra.mxu0 0
  %95 = vmatpush.bf16.msra.mxu0 0
  %96 = vmatpush.bf16.msra.mxu0 0
  %97 = vmatpush.bf16.msra.mxu0 %v81
  %98 = vmatpush.bf16.msra.mxu0 %v80
  %99 = vmatpush.bf16.msra.mxu0 %v79
  %100 = vmatpush.bf16.msra.mxu0 %v78
  %101 = vmatmul.bf16.gmra.mxu0 %v88
  %v102 = vpop.f32.mrf.mxu0
  %v103 = vadd.f32 0.0, %v102
  %v104 = vpop.f32.mrf.mxu0
  %v105 = vadd.f32 0.0, %v104
  %106 = vmatmul.bf16.gmra.mxu0 %v91
  %v107 = vpop.f32.mrf.mxu0
  %v108 = vadd.f32 0.0, %v107
  %v109 = vpop.f32.mrf.mxu0
  %v110 = vadd.f32 0.0, %v109
  %111 = vdwg.mxu0
  %112 = vst [vmem:[%s14] sm:$0xff] %v103
  %113 = vst [vmem:[%s14 + $0x8] sm:$0xff] %v105
  %114 = vst [vmem:[%s14 + $0x10] sm:$0xff] %v108
  %115 = vst [vmem:[%s14 + $0x18] sm:$0xff] %v110
  %v116 = vsel %vm86, %v48, 0.0
  %v117 = vsel %vm86, %v49, 0.0
  %v118 = vadd.f32 %v116, %v117
  %v119 = vsel %vm86, %v50, 0.0
  %v120 = vadd.f32 %v118, %v119
  %v121 = vsel %vm86, %v51, 0.0
  %v122 = vadd.f32 %v120, %v121
  %v123 = vrot.slane %v122, 4
  %v124 = vadd.f32 %v122, %v123
  %v125 = vrot.slane %v124, 2
  %v126 = vadd.f32 %v124, %v125
  %v127 = vrot.slane %v126, 1
  %v128 = vadd.f32 %v126, %v127
  %v129 = vmul.f32 %v48, %v48
  %v130 = vmul.f32 %v49, %v49
  %v131 = vmul.f32 %v50, %v50
  %v132 = vmul.f32 %v51, %v51
  %v133 = vsel %vm86, %v129, 0.0
  %v134 = vsel %vm86, %v130, 0.0
  %v135 = vadd.f32 %v133, %v134
  %v136 = vsel %vm86, %v131, 0.0
  %v137 = vadd.f32 %v135, %v136
  %v138 = vsel %vm86, %v132, 0.0
  %v139 = vadd.f32 %v137, %v138
  %v140 = vrot.slane %v139, 4
  %v141 = vadd.f32 %v139, %v140
  %v142 = vrot.slane %v141, 2
  %v143 = vadd.f32 %v141, %v142
  %v144 = vrot.slane %v143, 1
  %v145 = vadd.f32 %v143, %v144
  %v146 = vld [vmem:[%s5] sm:$0xff]
  %v147 = vld [vmem:[%s5 + $0x8] sm:$0xff]
  %v148 = vld [vmem:[%s5 + $0x10] sm:$0xff]
  %v149 = vld [vmem:[%s5 + $0x18] sm:$0xff]
  %v150 = vld [vmem:[%s5 + $0x20] sm:$0xff]
  %v151 = vld [vmem:[%s5 + $0x28] sm:$0xff]
  %v152 = vld [vmem:[%s5 + $0x30] sm:$0xff]
  %v153 = vld [vmem:[%s5 + $0x38] sm:$0xff]
  %v155 = vsel %vm86, %v128, 0
  %157 = vmatpush.msra.mxu0 0.0
  %158 = vmatpush.msra.mxu0 0.0
  %159 = vmatpush.msra.mxu0 0.0
  %160 = vmatpush.msra.mxu0 0.0
  %161 = vmatpush.msra.mxu0 0.0
  %162 = vmatpush.msra.mxu0 0.0
  %163 = vmatpush.msra.mxu0 0.0
  %164 = vmatpush.msra.mxu0 0.0
  %165 = vmatpush.msra.mxu0 %v153
  %166 = vmatpush.msra.mxu0 %v152
  %167 = vmatpush.msra.mxu0 %v151
  %168 = vmatpush.msra.mxu0 %v150
  %169 = vmatpush.msra.mxu0 %v149
  %170 = vmatpush.msra.mxu0 %v148
  %171 = vmatpush.msra.mxu0 %v147
  %172 = vmatpush.msra.mxu0 %v146
  %173 = vmatmul.f32.gmra.mxu0 %v155
  %v174 = vpop.f32.mrf.mxu0
  %v175 = vadd.f32 0.0, %v174
  %176 = vdwg.mxu0
  %v178 = vsel %vm86, %v145, 0
  %180 = vmatpush.msra.mxu0 0.0
  %181 = vmatpush.msra.mxu0 0.0
  %182 = vmatpush.msra.mxu0 0.0
  %183 = vmatpush.msra.mxu0 0.0
  %184 = vmatpush.msra.mxu0 0.0
  %185 = vmatpush.msra.mxu0 0.0
  %186 = vmatpush.msra.mxu0 0.0
  %187 = vmatpush.msra.mxu0 0.0
  %188 = vmatpush.msra.mxu0 %v153
  %189 = vmatpush.msra.mxu0 %v152
  %190 = vmatpush.msra.mxu0 %v151
  %191 = vmatpush.msra.mxu0 %v150
  %192 = vmatpush.msra.mxu0 %v149
  %193 = vmatpush.msra.mxu0 %v148
  %194 = vmatpush.msra.mxu0 %v147
  %195 = vmatpush.msra.mxu0 %v146
  %196 = vmatmul.f32.gmra.mxu0 %v178
  %v197 = vpop.f32.mrf.mxu0
  %v198 = vadd.f32 0.0, %v197
  %199 = vdwg.mxu0
  %v200 = vrcp.pop 512.0
  %v201 = vmul.f32 512.0, %v200
  %v202 = vsub.f32 1.0, %v201
  %v203 = vmul.f32 %v200, %v202
  %v204 = vadd.f32 %v200, %v203
  %vm205 = vweird.f32 %v200
  %v206 = vsel %vm205, %v200, %v204
  %v207 = vmul.f32 %v175, %v206
  %v208 = vmul.f32 %v198, %v206
  %v209 = vmul.f32 %v207, %v207
  %v210 = vsub.f32 %v208, %v209
  %v211 = vld [vmem:[%s3] sm:$0x1]
  %v212 = vadd.f32 %v210, 0.001
  %v213 = vrsqrt.pop %v212
  %v214 = vmul.f32 %v213, %v212
  %v215 = vmul.f32 %v214, %v213
  %v216 = vmul.f32 0.5, %v215
  %v217 = vsub.f32 1.5, %v216
  %v218 = vmul.f32 %v213, %v217
  %vm219 = vweird.f32 %v212
  %vm220 = vweird.f32 %v213
  %vm221 = vmor %vm219, %vm220
  %v222 = vsel %vm221, %v213, %v218
  %v223 = vmul.f32 %v211, %v222
  %v224 = vld [vmem:[%s4] sm:$0x1]
  %v225 = vmul.f32 %v207, %v223
  %v226 = vsub.f32 %v224, %v225
  %v227 = vld [vmem:[%s6] sm:$0xf]
  %vm228 = vcmask 31744
  %v230 = vsel %vm228, %v223, 0
  %vm232 = vcmask 1043456
  %v234 = vsel %vm232, %v227, 0
  %236 = vmatpush.msra.mxu0 0.0
  %237 = vmatpush.msra.mxu0 0.0
  %238 = vmatpush.msra.mxu0 0.0
  %239 = vmatpush.msra.mxu0 0.0
  %240 = vmatpush.msra.mxu0 0.0
  %241 = vmatpush.msra.mxu0 0.0
  %242 = vmatpush.msra.mxu0 0.0
  %243 = vmatpush.msra.mxu0 0.0
  %244 = vmatpush.msra.mxu0 0.0
  %245 = vmatpush.msra.mxu0 0.0
  %246 = vmatpush.msra.mxu0 0.0
  %247 = vmatpush.msra.mxu0 0.0
  %248 = vmatpush.msra.mxu0 0.0
  %249 = vmatpush.msra.mxu0 0.0
  %250 = vmatpush.msra.mxu0 0.0
  %251 = vmatpush.msra.mxu0 %v234
  %252 = vmatmul.f32.gmra.mxu0 %v230
  %v253 = vpop.f32.mrf.mxu0
  %v254 = vadd.f32 0.0, %v253
  %255 = vdwg.mxu0
  %v257 = vsel %vm228, %v226, 0
  %259 = vmatpush.msra.mxu0 0.0
  %260 = vmatpush.msra.mxu0 0.0
  %261 = vmatpush.msra.mxu0 0.0
  %262 = vmatpush.msra.mxu0 0.0
  %263 = vmatpush.msra.mxu0 0.0
  %264 = vmatpush.msra.mxu0 0.0
  %265 = vmatpush.msra.mxu0 0.0
  %266 = vmatpush.msra.mxu0 0.0
  %267 = vmatpush.msra.mxu0 0.0
  %268 = vmatpush.msra.mxu0 0.0
  %269 = vmatpush.msra.mxu0 0.0
  %270 = vmatpush.msra.mxu0 0.0
  %271 = vmatpush.msra.mxu0 0.0
  %272 = vmatpush.msra.mxu0 0.0
  %273 = vmatpush.msra.mxu0 0.0
  %274 = vmatpush.msra.mxu0 %v234
  %275 = vmatmul.f32.gmra.mxu0 %v257
  %v276 = vpop.f32.mrf.mxu0
  %v277 = vadd.f32 0.0, %v276
  %278 = vdwg.mxu0
  %v279 = vperm.slane %v254, 0
  %v280 = vmul.f32 %v48, %v279
  %v281 = vmul.f32 %v49, %v279
  %v282 = vmul.f32 %v50, %v279
  %v283 = vmul.f32 %v51, %v279
  %v284 = vperm.slane %v277, 0
  %v285 = vadd.f32 %v280, %v284
  %v286 = vadd.f32 %v281, %v284
  %v287 = vadd.f32 %v282, %v284
  %v288 = vadd.f32 %v283, %v284
  %vm289 = vcmp.ge.f32.partialorder %v285, 0.0
  %vm290 = vcmp.ge.f32.partialorder %v286, 0.0
  %vm291 = vcmp.ge.f32.partialorder %v287, 0.0
  %vm292 = vcmp.ge.f32.partialorder %v288, 0.0
  %v293 = vmul.f32 %v285, 0.1
  %v294 = vmul.f32 %v286, 0.1
  %v295 = vmul.f32 %v287, 0.1
  %v296 = vmul.f32 %v288, 0.1
  %v297 = vsel %vm289, %v285, %v293
  %v298 = vsel %vm290, %v286, %v294
  %v299 = vsel %vm291, %v287, %v295
  %v300 = vsel %vm292, %v288, %v296
  %v301 = vld [vmem:[%s1] sm:$0xff]
  %v302 = vld [vmem:[%s1 + $0x8] sm:$0xff]
  %v303 = vld [vmem:[%s1 + $0x10] sm:$0xff]
  %v304 = vld [vmem:[%s1 + $0x18] sm:$0xff]
  %v305 = vld [vmem:[%s2] sm:$0xff]
  %v306 = vld [vmem:[%s2 + $0x8] sm:$0xff]
  %v307 = vld [vmem:[%s2 + $0x10] sm:$0xff]
  %v308 = vld [vmem:[%s2 + $0x18] sm:$0xff]
  %v309 = vrot.slane %v297, 7
  %v310 = vrot.slane %v298, 7
  %v311 = vrot.slane %v299, 7
  %v312 = vrot.slane %v300, 7
  %v313 = vlaneseq
  %v314 = vshrl.u32 %v313, 7
  %vm315 = vcmp.lt.s32.totalorder %v314, 1
  %v316 = vsel %vm315, %v311, %v312
  %v317 = vsel %vm315, %v310, %v311
  %v318 = vsel %vm315, %v309, %v310
  %v319 = vsel %vm315, %v312, %v309
  %321 = vset.pattern.permute.xlu0 0
  %322 = vperm.xlu0 %321, %v301
  %v323 = vpop.permute.xlu0 %322
  %326 = vset.pattern.permute.xlu0 0
  %327 = vperm.xlu0 %326, %v302
  %v328 = vpop.permute.xlu0 %327
  %331 = vset.pattern.permute.xlu0 0
  %332 = vperm.xlu0 %331, %v303
  %v333 = vpop.permute.xlu0 %332
  %336 = vset.pattern.permute.xlu0 0
  %337 = vperm.xlu0 %336, %v304
  %v338 = vpop.permute.xlu0 %337
  %v340 = vmul.f32 %v319, %v323
  %v341 = vmul.f32 %v318, %v328
  %v342 = vmul.f32 %v317, %v333
  %v343 = vmul.f32 %v316, %v338
  %v344 = vpack.c.bf16 %v341, %v340
  %v345 = vpack.c.bf16 %v343, %v342
  %v346 = vpack.c.bf16 %v298, %v297
  %v347 = vpack.c.bf16 %v300, %v299
  %v348 = vrot.slane %v297, 1
  %v349 = vrot.slane %v298, 1
  %v350 = vrot.slane %v299, 1
  %v351 = vrot.slane %v300, 1
  %vm352 = vcmp.lt.s32.totalorder %v314, 7
  %v353 = vsel %vm352, %v350, %v351
  %v354 = vsel %vm352, %v349, %v350
  %v355 = vsel %vm352, %v348, %v349
  %v356 = vsel %vm352, %v351, %v348
  %358 = vset.pattern.permute.xlu0 0
  %359 = vperm.xlu0 %358, %v305
  %v360 = vpop.permute.xlu0 %359
  %363 = vset.pattern.permute.xlu0 0
  %364 = vperm.xlu0 %363, %v306
  %v365 = vpop.permute.xlu0 %364
  %368 = vset.pattern.permute.xlu0 0
  %369 = vperm.xlu0 %368, %v307
  %v370 = vpop.permute.xlu0 %369
  %373 = vset.pattern.permute.xlu0 0
  %374 = vperm.xlu0 %373, %v308
  %v375 = vpop.permute.xlu0 %374
  %v377 = vmul.f32 %v355, %v360
  %v378 = vmul.f32 %v354, %v365
  %v379 = vmul.f32 %v353, %v370
  %v380 = vmul.f32 %v356, %v375
  %v381 = vpack.c.bf16 %v378, %v377
  %v382 = vpack.c.bf16 %v380, %v379
  %v383 = vld [vmem:[%s7] sm:$0xf]
  %v384 = vld [vmem:[%s7 + $0x4] sm:$0xf]
  %v385 = vld [vmem:[%s7 + $0x8] sm:$0xf]
  %v386 = vld [vmem:[%s7 + $0xc] sm:$0xf]
  %v387 = vld [vmem:[%s7 + $0x10] sm:$0xf]
  %v388 = vld [vmem:[%s7 + $0x14] sm:$0xf]
  %v389 = vld [vmem:[%s7 + $0x18] sm:$0xf]
  %v390 = vld [vmem:[%s7 + $0x1c] sm:$0xf]
  %s391 = scalar_lea.vmem %s7, 32
  %v392 = vld [vmem:[%s391] sm:$0xf]
  %v393 = vld [vmem:[%s391 + $0x4] sm:$0xf]
  %v394 = vld [vmem:[%s391 + $0x8] sm:$0xf]
  %v395 = vld [vmem:[%s391 + $0xc] sm:$0xf]
  %v396 = vld [vmem:[%s391 + $0x10] sm:$0xf]
  %v397 = vld [vmem:[%s391 + $0x14] sm:$0xf]
  %v398 = vld [vmem:[%s391 + $0x18] sm:$0xf]
  %v399 = vld [vmem:[%s391 + $0x1c] sm:$0xf]
  %v408 = vunpack.c.l.b16 %v392
  %v409 = vunpack.c.l.b16 %v393
  %v410 = vunpack.c.l.b16 %v394
  %v411 = vunpack.c.l.b16 %v395
  %v412 = vunpack.c.l.b16 %v396
  %v413 = vunpack.c.l.b16 %v397
  %v414 = vunpack.c.l.b16 %v398
  %v415 = vunpack.c.l.b16 %v399
  %v416 = vpack.c.b16 %v409, %v408
  %v417 = vpack.c.b16 %v411, %v410
  %v418 = vpack.c.b16 %v413, %v412
  %v419 = vpack.c.b16 %v415, %v414
  %v425 = vsel %vm86, %v346, 0
  %v428 = vsel %vm86, %v347, 0
  %430 = vmatpush.bf16.msra.mxu0 0
  %431 = vmatpush.bf16.msra.mxu0 0
  %432 = vmatpush.bf16.msra.mxu0 0
  %433 = vmatpush.bf16.msra.mxu0 0
  %434 = vmatpush.bf16.msra.mxu0 %v419
  %435 = vmatpush.bf16.msra.mxu0 %v418
  %436 = vmatpush.bf16.msra.mxu0 %v417
  %437 = vmatpush.bf16.msra.mxu0 %v416
  %438 = vmatmul.bf16.gmra.mxu0 %v425
  %v439 = vpop.f32.mrf.mxu0
  %v440 = vadd.f32 0.0, %v439
  %v441 = vpop.f32.mrf.mxu0
  %v442 = vadd.f32 0.0, %v441
  %443 = vmatmul.bf16.gmra.mxu0 %v428
  %v444 = vpop.f32.mrf.mxu0
  %v445 = vadd.f32 0.0, %v444
  %v446 = vpop.f32.mrf.mxu0
  %v447 = vadd.f32 0.0, %v446
  %448 = vdwg.mxu0
  %v457 = vunpack.c.l.b16 %v383
  %v458 = vunpack.c.l.b16 %v384
  %v459 = vunpack.c.l.b16 %v385
  %v460 = vunpack.c.l.b16 %v386
  %v461 = vunpack.c.l.b16 %v387
  %v462 = vunpack.c.l.b16 %v388
  %v463 = vunpack.c.l.b16 %v389
  %v464 = vunpack.c.l.b16 %v390
  %v465 = vpack.c.b16 %v458, %v457
  %v466 = vpack.c.b16 %v460, %v459
  %v467 = vpack.c.b16 %v462, %v461
  %v468 = vpack.c.b16 %v464, %v463
  %v474 = vsel %vm86, %v344, 0
  %v477 = vsel %vm86, %v345, 0
  %479 = vmatpush.bf16.msra.mxu0 0
  %480 = vmatpush.bf16.msra.mxu0 0
  %481 = vmatpush.bf16.msra.mxu0 0
  %482 = vmatpush.bf16.msra.mxu0 0
  %483 = vmatpush.bf16.msra.mxu0 %v468
  %484 = vmatpush.bf16.msra.mxu0 %v467
  %485 = vmatpush.bf16.msra.mxu0 %v466
  %486 = vmatpush.bf16.msra.mxu0 %v465
  %487 = vmatmul.bf16.gmra.mxu0 %v474
  %v488 = vpop.f32.mrf.mxu0
  %v489 = vadd.f32 %v440, %v488
  %v490 = vpop.f32.mrf.mxu0
  %v491 = vadd.f32 %v442, %v490
  %492 = vmatmul.bf16.gmra.mxu0 %v477
  %v493 = vpop.f32.mrf.mxu0
  %v494 = vadd.f32 %v445, %v493
  %v495 = vpop.f32.mrf.mxu0
  %v496 = vadd.f32 %v447, %v495
  %497 = vdwg.mxu0
  %s498 = scalar_lea.vmem %s7, 64
  %v499 = vld [vmem:[%s498] sm:$0xf]
  %v500 = vld [vmem:[%s498 + $0x4] sm:$0xf]
  %v501 = vld [vmem:[%s498 + $0x8] sm:$0xf]
  %v502 = vld [vmem:[%s498 + $0xc] sm:$0xf]
  %v503 = vld [vmem:[%s498 + $0x10] sm:$0xf]
  %v504 = vld [vmem:[%s498 + $0x14] sm:$0xf]
  %v505 = vld [vmem:[%s498 + $0x18] sm:$0xf]
  %v506 = vld [vmem:[%s498 + $0x1c] sm:$0xf]
  %v515 = vunpack.c.l.b16 %v499
  %v516 = vunpack.c.l.b16 %v500
  %v517 = vunpack.c.l.b16 %v501
  %v518 = vunpack.c.l.b16 %v502
  %v519 = vunpack.c.l.b16 %v503
  %v520 = vunpack.c.l.b16 %v504
  %v521 = vunpack.c.l.b16 %v505
  %v522 = vunpack.c.l.b16 %v506
  %v523 = vpack.c.b16 %v516, %v515
  %v524 = vpack.c.b16 %v518, %v517
  %v525 = vpack.c.b16 %v520, %v519
  %v526 = vpack.c.b16 %v522, %v521
  %v532 = vsel %vm86, %v381, 0
  %v535 = vsel %vm86, %v382, 0
  %537 = vmatpush.bf16.msra.mxu0 0
  %538 = vmatpush.bf16.msra.mxu0 0
  %539 = vmatpush.bf16.msra.mxu0 0
  %540 = vmatpush.bf16.msra.mxu0 0
  %541 = vmatpush.bf16.msra.mxu0 %v526
  %542 = vmatpush.bf16.msra.mxu0 %v525
  %543 = vmatpush.bf16.msra.mxu0 %v524
  %544 = vmatpush.bf16.msra.mxu0 %v523
  %545 = vmatmul.bf16.gmra.mxu0 %v532
  %v546 = vpop.f32.mrf.mxu0
  %v547 = vadd.f32 0.0, %v546
  %v548 = vpop.f32.mrf.mxu0
  %v549 = vadd.f32 0.0, %v548
  %550 = vmatmul.bf16.gmra.mxu0 %v535
  %v551 = vpop.f32.mrf.mxu0
  %v552 = vadd.f32 0.0, %v551
  %v553 = vpop.f32.mrf.mxu0
  %v554 = vadd.f32 0.0, %v553
  %555 = vdwg.mxu0
  %v556 = vadd.f32 %v489, %v547
  %v557 = vadd.f32 %v491, %v549
  %v558 = vadd.f32 %v494, %v552
  %v559 = vadd.f32 %v496, %v554
  %v560 = vadd.f32 %v556, %v557
  %v561 = vadd.f32 %v560, %v558
  %v562 = vadd.f32 %v561, %v559
  %v563 = vrot.slane %v562, 4
  %v564 = vadd.f32 %v562, %v563
  %v565 = vrot.slane %v564, 2
  %v566 = vadd.f32 %v564, %v565
  %v567 = vrot.slane %v566, 1
  %v568 = vadd.f32 %v566, %v567
  %v569 = vmul.f32 %v556, %v556
  %v570 = vmul.f32 %v557, %v557
  %v571 = vmul.f32 %v558, %v558
  %v572 = vmul.f32 %v559, %v559
  %v573 = vadd.f32 %v569, %v570
  %v574 = vadd.f32 %v573, %v571
  %v575 = vadd.f32 %v574, %v572
  %v576 = vrot.slane %v575, 4
  %v577 = vadd.f32 %v575, %v576
  %v578 = vrot.slane %v577, 2
  %v579 = vadd.f32 %v577, %v578
  %v580 = vrot.slane %v579, 1
  %v581 = vadd.f32 %v579, %v580
  %v582 = vld [vmem:[%s10] sm:$0xff]
  %v583 = vld [vmem:[%s10 + $0x8] sm:$0xff]
  %v584 = vld [vmem:[%s10 + $0x10] sm:$0xff]
  %v585 = vld [vmem:[%s10 + $0x18] sm:$0xff]
  %v586 = vld [vmem:[%s10 + $0x20] sm:$0xff]
  %v587 = vld [vmem:[%s10 + $0x28] sm:$0xff]
  %v588 = vld [vmem:[%s10 + $0x30] sm:$0xff]
  %v589 = vld [vmem:[%s10 + $0x38] sm:$0xff]
  %v590 = vld [vmem:[%s10 + $0x40] sm:$0xff]
  %v591 = vld [vmem:[%s10 + $0x48] sm:$0xff]
  %v592 = vld [vmem:[%s10 + $0x50] sm:$0xff]
  %v593 = vld [vmem:[%s10 + $0x58] sm:$0xff]
  %v594 = vld [vmem:[%s10 + $0x60] sm:$0xff]
  %v595 = vld [vmem:[%s10 + $0x68] sm:$0xff]
  %v596 = vld [vmem:[%s10 + $0x70] sm:$0xff]
  %v597 = vld [vmem:[%s10 + $0x78] sm:$0xff]
  %598 = vmatpush.msra.mxu0 %v597
  %599 = vmatpush.msra.mxu0 %v596
  %600 = vmatpush.msra.mxu0 %v595
  %601 = vmatpush.msra.mxu0 %v594
  %602 = vmatpush.msra.mxu0 %v593
  %603 = vmatpush.msra.mxu0 %v592
  %604 = vmatpush.msra.mxu0 %v591
  %605 = vmatpush.msra.mxu0 %v590
  %606 = vmatpush.msra.mxu0 %v589
  %607 = vmatpush.msra.mxu0 %v588
  %608 = vmatpush.msra.mxu0 %v587
  %609 = vmatpush.msra.mxu0 %v586
  %610 = vmatpush.msra.mxu0 %v585
  %611 = vmatpush.msra.mxu0 %v584
  %612 = vmatpush.msra.mxu0 %v583
  %613 = vmatpush.msra.mxu0 %v582
  %614 = vmatmul.f32.gmra.mxu0 %v568
  %v615 = vpop.f32.mrf.mxu0
  %v616 = vadd.f32 0.0, %v615
  %617 = vdwg.mxu0
  %618 = vmatpush.msra.mxu0 %v597
  %619 = vmatpush.msra.mxu0 %v596
  %620 = vmatpush.msra.mxu0 %v595
  %621 = vmatpush.msra.mxu0 %v594
  %622 = vmatpush.msra.mxu0 %v593
  %623 = vmatpush.msra.mxu0 %v592
  %624 = vmatpush.msra.mxu0 %v591
  %625 = vmatpush.msra.mxu0 %v590
  %626 = vmatpush.msra.mxu0 %v589
  %627 = vmatpush.msra.mxu0 %v588
  %628 = vmatpush.msra.mxu0 %v587
  %629 = vmatpush.msra.mxu0 %v586
  %630 = vmatpush.msra.mxu0 %v585
  %631 = vmatpush.msra.mxu0 %v584
  %632 = vmatpush.msra.mxu0 %v583
  %633 = vmatpush.msra.mxu0 %v582
  %634 = vmatmul.f32.gmra.mxu0 %v581
  %v635 = vpop.f32.mrf.mxu0
  %v636 = vadd.f32 0.0, %v635
  %637 = vdwg.mxu0
  %v638 = vmul.f32 %v616, %v206
  %v639 = vmul.f32 %v636, %v206
  %v640 = vmul.f32 %v638, %v638
  %v641 = vsub.f32 %v639, %v640
  %v642 = vld [vmem:[%s8] sm:$0x1]
  %v643 = vadd.f32 %v641, 0.001
  %v644 = vrsqrt.pop %v643
  %v645 = vmul.f32 %v644, %v643
  %v646 = vmul.f32 %v645, %v644
  %v647 = vmul.f32 0.5, %v646
  %v648 = vsub.f32 1.5, %v647
  %v649 = vmul.f32 %v644, %v648
  %vm650 = vweird.f32 %v643
  %vm651 = vweird.f32 %v644
  %vm652 = vmor %vm650, %vm651
  %v653 = vsel %vm652, %v644, %v649
  %v654 = vmul.f32 %v642, %v653
  %v655 = vld [vmem:[%s9] sm:$0x1]
  %v656 = vmul.f32 %v638, %v654
  %v657 = vsub.f32 %v655, %v656
  %v658 = vld [vmem:[%s11] sm:$0xff]
  %vm659 = vcmask 64512
  %v661 = vsel %vm659, %v654, 0
  %663 = vmatpush.msra.mxu0 0.0
  %664 = vmatpush.msra.mxu0 0.0
  %665 = vmatpush.msra.mxu0 0.0
  %666 = vmatpush.msra.mxu0 0.0
  %667 = vmatpush.msra.mxu0 0.0
  %668 = vmatpush.msra.mxu0 0.0
  %669 = vmatpush.msra.mxu0 0.0
  %670 = vmatpush.msra.mxu0 0.0
  %671 = vmatpush.msra.mxu0 0.0
  %672 = vmatpush.msra.mxu0 0.0
  %673 = vmatpush.msra.mxu0 0.0
  %674 = vmatpush.msra.mxu0 0.0
  %675 = vmatpush.msra.mxu0 0.0
  %676 = vmatpush.msra.mxu0 0.0
  %677 = vmatpush.msra.mxu0 0.0
  %678 = vmatpush.msra.mxu0 %v658
  %679 = vmatmul.f32.gmra.mxu0 %v661
  %v680 = vpop.f32.mrf.mxu0
  %v681 = vadd.f32 0.0, %v680
  %682 = vdwg.mxu0
  %v684 = vsel %vm659, %v657, 0
  %686 = vmatpush.msra.mxu0 0.0
  %687 = vmatpush.msra.mxu0 0.0
  %688 = vmatpush.msra.mxu0 0.0
  %689 = vmatpush.msra.mxu0 0.0
  %690 = vmatpush.msra.mxu0 0.0
  %691 = vmatpush.msra.mxu0 0.0
  %692 = vmatpush.msra.mxu0 0.0
  %693 = vmatpush.msra.mxu0 0.0
  %694 = vmatpush.msra.mxu0 0.0
  %695 = vmatpush.msra.mxu0 0.0
  %696 = vmatpush.msra.mxu0 0.0
  %697 = vmatpush.msra.mxu0 0.0
  %698 = vmatpush.msra.mxu0 0.0
  %699 = vmatpush.msra.mxu0 0.0
  %700 = vmatpush.msra.mxu0 0.0
  %701 = vmatpush.msra.mxu0 %v658
  %702 = vmatmul.f32.gmra.mxu0 %v684
  %v703 = vpop.f32.mrf.mxu0
  %v704 = vadd.f32 0.0, %v703
  %705 = vdwg.mxu0
  %v706 = vperm.slane %v681, 0
  %v707 = vmul.f32 %v556, %v706
  %v708 = vmul.f32 %v557, %v706
  %v709 = vmul.f32 %v558, %v706
  %v710 = vmul.f32 %v559, %v706
  %v711 = vperm.slane %v704, 0
  %v712 = vadd.f32 %v707, %v711
  %v713 = vadd.f32 %v708, %v711
  %v714 = vadd.f32 %v709, %v711
  %v715 = vadd.f32 %v710, %v711
  %vm716 = vcmp.ge.f32.partialorder %v712, 0.0
  %vm717 = vcmp.ge.f32.partialorder %v713, 0.0
  %vm718 = vcmp.ge.f32.partialorder %v714, 0.0
  %vm719 = vcmp.ge.f32.partialorder %v715, 0.0
  %v720 = vmul.f32 %v712, 0.1
  %v721 = vmul.f32 %v713, 0.1
  %v722 = vmul.f32 %v714, 0.1
  %v723 = vmul.f32 %v715, 0.1
  %v724 = vsel %vm716, %v712, %v720
  %v725 = vsel %vm717, %v713, %v721
  %v726 = vsel %vm718, %v714, %v722
  %v727 = vsel %vm719, %v715, %v723
  %v728 = vrot.slane %v724, 7
  %v729 = vrot.slane %v725, 7
  %v730 = vrot.slane %v726, 7
  %v731 = vrot.slane %v727, 7
  %v732 = vsel %vm315, %v730, %v731
  %v733 = vsel %vm315, %v729, %v730
  %v734 = vsel %vm315, %v728, %v729
  %v735 = vsel %vm315, %v731, %v728
  %v736 = vmul.f32 %v735, %v323
  %v737 = vmul.f32 %v734, %v328
  %v738 = vmul.f32 %v733, %v333
  %v739 = vmul.f32 %v732, %v338
  %v740 = vpack.c.bf16 %v737, %v736
  %v741 = vpack.c.bf16 %v739, %v738
  %v742 = vpack.c.bf16 %v725, %v724
  %v743 = vpack.c.bf16 %v727, %v726
  %v744 = vrot.slane %v724, 1
  %v745 = vrot.slane %v725, 1
  %v746 = vrot.slane %v726, 1
  %v747 = vrot.slane %v727, 1
  %v748 = vsel %vm352, %v746, %v747
  %v749 = vsel %vm352, %v745, %v746
  %v750 = vsel %vm352, %v744, %v745
  %v751 = vsel %vm352, %v747, %v744
  %v752 = vmul.f32 %v750, %v360
  %v753 = vmul.f32 %v749, %v365
  %v754 = vmul.f32 %v748, %v370
  %v755 = vmul.f32 %v751, %v375
  %v756 = vpack.c.bf16 %v753, %v752
  %v757 = vpack.c.bf16 %v755, %v754
  %v758 = vld [vmem:[%s12] sm:$0xf]
  %v759 = vld [vmem:[%s12 + $0x4] sm:$0xf]
  %v760 = vld [vmem:[%s12 + $0x8] sm:$0xf]
  %v761 = vld [vmem:[%s12 + $0xc] sm:$0xf]
  %v762 = vld [vmem:[%s12 + $0x10] sm:$0xf]
  %v763 = vld [vmem:[%s12 + $0x14] sm:$0xf]
  %v764 = vld [vmem:[%s12 + $0x18] sm:$0xf]
  %v765 = vld [vmem:[%s12 + $0x1c] sm:$0xf]
  %v766 = vld [vmem:[%s12 + $0x20] sm:$0xf]
  %v767 = vld [vmem:[%s12 + $0x24] sm:$0xf]
  %v768 = vld [vmem:[%s12 + $0x28] sm:$0xf]
  %v769 = vld [vmem:[%s12 + $0x2c] sm:$0xf]
  %v770 = vld [vmem:[%s12 + $0x30] sm:$0xf]
  %v771 = vld [vmem:[%s12 + $0x34] sm:$0xf]
  %v772 = vld [vmem:[%s12 + $0x38] sm:$0xf]
  %v773 = vld [vmem:[%s12 + $0x3c] sm:$0xf]
  %s774 = scalar_lea.vmem %s12, 64
  %v775 = vld [vmem:[%s774] sm:$0xf]
  %v776 = vld [vmem:[%s774 + $0x4] sm:$0xf]
  %v777 = vld [vmem:[%s774 + $0x8] sm:$0xf]
  %v778 = vld [vmem:[%s774 + $0xc] sm:$0xf]
  %v779 = vld [vmem:[%s774 + $0x10] sm:$0xf]
  %v780 = vld [vmem:[%s774 + $0x14] sm:$0xf]
  %v781 = vld [vmem:[%s774 + $0x18] sm:$0xf]
  %v782 = vld [vmem:[%s774 + $0x1c] sm:$0xf]
  %v783 = vld [vmem:[%s774 + $0x20] sm:$0xf]
  %v784 = vld [vmem:[%s774 + $0x24] sm:$0xf]
  %v785 = vld [vmem:[%s774 + $0x28] sm:$0xf]
  %v786 = vld [vmem:[%s774 + $0x2c] sm:$0xf]
  %v787 = vld [vmem:[%s774 + $0x30] sm:$0xf]
  %v788 = vld [vmem:[%s774 + $0x34] sm:$0xf]
  %v789 = vld [vmem:[%s774 + $0x38] sm:$0xf]
  %v790 = vld [vmem:[%s774 + $0x3c] sm:$0xf]
  %v807 = vunpack.c.l.b16 %v775
  %v808 = vunpack.c.l.b16 %v776
  %v809 = vunpack.c.l.b16 %v777
  %v810 = vunpack.c.l.b16 %v778
  %v811 = vunpack.c.l.b16 %v779
  %v812 = vunpack.c.l.b16 %v780
  %v813 = vunpack.c.l.b16 %v781
  %v814 = vunpack.c.l.b16 %v782
  %v815 = vunpack.c.l.b16 %v783
  %v816 = vunpack.c.l.b16 %v784
  %v817 = vunpack.c.l.b16 %v785
  %v818 = vunpack.c.l.b16 %v786
  %v819 = vunpack.c.l.b16 %v787
  %v820 = vunpack.c.l.b16 %v788
  %v821 = vunpack.c.l.b16 %v789
  %v822 = vunpack.c.l.b16 %v790
  %v823 = vpack.c.b16 %v808, %v807
  %v824 = vpack.c.b16 %v810, %v809
  %v825 = vpack.c.b16 %v812, %v811
  %v826 = vpack.c.b16 %v814, %v813
  %v827 = vpack.c.b16 %v816, %v815
  %v828 = vpack.c.b16 %v818, %v817
  %v829 = vpack.c.b16 %v820, %v819
  %v830 = vpack.c.b16 %v822, %v821
  %839 = vmatpush.bf16.msra.mxu0 %v830
  %840 = vmatpush.bf16.msra.mxu0 %v829
  %841 = vmatpush.bf16.msra.mxu0 %v828
  %842 = vmatpush.bf16.msra.mxu0 %v827
  %843 = vmatpush.bf16.msra.mxu0 %v826
  %844 = vmatpush.bf16.msra.mxu0 %v825
  %845 = vmatpush.bf16.msra.mxu0 %v824
  %846 = vmatpush.bf16.msra.mxu0 %v823
  %847 = vmatmul.bf16.gmra.mxu0 %v742
  %v848 = vpop.f32.mrf.mxu0
  %v849 = vadd.f32 0.0, %v848
  %v850 = vpop.f32.mrf.mxu0
  %v851 = vadd.f32 0.0, %v850
  %852 = vmatmul.bf16.gmra.mxu0 %v743
  %v853 = vpop.f32.mrf.mxu0
  %v854 = vadd.f32 0.0, %v853
  %v855 = vpop.f32.mrf.mxu0
  %v856 = vadd.f32 0.0, %v855
  %857 = vdwg.mxu0
  %v874 = vunpack.c.l.b16 %v758
  %v875 = vunpack.c.l.b16 %v759
  %v876 = vunpack.c.l.b16 %v760
  %v877 = vunpack.c.l.b16 %v761
  %v878 = vunpack.c.l.b16 %v762
  %v879 = vunpack.c.l.b16 %v763
  %v880 = vunpack.c.l.b16 %v764
  %v881 = vunpack.c.l.b16 %v765
  %v882 = vunpack.c.l.b16 %v766
  %v883 = vunpack.c.l.b16 %v767
  %v884 = vunpack.c.l.b16 %v768
  %v885 = vunpack.c.l.b16 %v769
  %v886 = vunpack.c.l.b16 %v770
  %v887 = vunpack.c.l.b16 %v771
  %v888 = vunpack.c.l.b16 %v772
  %v889 = vunpack.c.l.b16 %v773
  %v890 = vpack.c.b16 %v875, %v874
  %v891 = vpack.c.b16 %v877, %v876
  %v892 = vpack.c.b16 %v879, %v878
  %v893 = vpack.c.b16 %v881, %v880
  %v894 = vpack.c.b16 %v883, %v882
  %v895 = vpack.c.b16 %v885, %v884
  %v896 = vpack.c.b16 %v887, %v886
  %v897 = vpack.c.b16 %v889, %v888
  %906 = vmatpush.bf16.msra.mxu0 %v897
  %907 = vmatpush.bf16.msra.mxu0 %v896
  %908 = vmatpush.bf16.msra.mxu0 %v895
  %909 = vmatpush.bf16.msra.mxu0 %v894
  %910 = vmatpush.bf16.msra.mxu0 %v893
  %911 = vmatpush.bf16.msra.mxu0 %v892
  %912 = vmatpush.bf16.msra.mxu0 %v891
  %913 = vmatpush.bf16.msra.mxu0 %v890
  %914 = vmatmul.bf16.gmra.mxu0 %v740
  %v915 = vpop.f32.mrf.mxu0
  %v916 = vadd.f32 %v849, %v915
  %v917 = vpop.f32.mrf.mxu0
  %v918 = vadd.f32 %v851, %v917
  %919 = vmatmul.bf16.gmra.mxu0 %v741
  %v920 = vpop.f32.mrf.mxu0
  %v921 = vadd.f32 %v854, %v920
  %v922 = vpop.f32.mrf.mxu0
  %v923 = vadd.f32 %v856, %v922
  %924 = vdwg.mxu0
  %s925 = scalar_lea.vmem %s12, 128
  %v926 = vld [vmem:[%s925] sm:$0xf]
  %v927 = vld [vmem:[%s925 + $0x4] sm:$0xf]
  %v928 = vld [vmem:[%s925 + $0x8] sm:$0xf]
  %v929 = vld [vmem:[%s925 + $0xc] sm:$0xf]
  %v930 = vld [vmem:[%s925 + $0x10] sm:$0xf]
  %v931 = vld [vmem:[%s925 + $0x14] sm:$0xf]
  %v932 = vld [vmem:[%s925 + $0x18] sm:$0xf]
  %v933 = vld [vmem:[%s925 + $0x1c] sm:$0xf]
  %v934 = vld [vmem:[%s925 + $0x20] sm:$0xf]
  %v935 = vld [vmem:[%s925 + $0x24] sm:$0xf]
  %v936 = vld [vmem:[%s925 + $0x28] sm:$0xf]
  %v937 = vld [vmem:[%s925 + $0x2c] sm:$0xf]
  %v938 = vld [vmem:[%s925 + $0x30] sm:$0xf]
  %v939 = vld [vmem:[%s925 + $0x34] sm:$0xf]
  %v940 = vld [vmem:[%s925 + $0x38] sm:$0xf]
  %v941 = vld [vmem:[%s925 + $0x3c] sm:$0xf]
  %v958 = vunpack.c.l.b16 %v926
  %v959 = vunpack.c.l.b16 %v927
  %v960 = vunpack.c.l.b16 %v928
  %v961 = vunpack.c.l.b16 %v929
  %v962 = vunpack.c.l.b16 %v930
  %v963 = vunpack.c.l.b16 %v931
  %v964 = vunpack.c.l.b16 %v932
  %v965 = vunpack.c.l.b16 %v933
  %v966 = vunpack.c.l.b16 %v934
  %v967 = vunpack.c.l.b16 %v935
  %v968 = vunpack.c.l.b16 %v936
  %v969 = vunpack.c.l.b16 %v937
  %v970 = vunpack.c.l.b16 %v938
  %v971 = vunpack.c.l.b16 %v939
  %v972 = vunpack.c.l.b16 %v940
  %v973 = vunpack.c.l.b16 %v941
  %v974 = vpack.c.b16 %v959, %v958
  %v975 = vpack.c.b16 %v961, %v960
  %v976 = vpack.c.b16 %v963, %v962
  %v977 = vpack.c.b16 %v965, %v964
  %v978 = vpack.c.b16 %v967, %v966
  %v979 = vpack.c.b16 %v969, %v968
  %v980 = vpack.c.b16 %v971, %v970
  %v981 = vpack.c.b16 %v973, %v972
  %990 = vmatpush.bf16.msra.mxu0 %v981
  %991 = vmatpush.bf16.msra.mxu0 %v980
  %992 = vmatpush.bf16.msra.mxu0 %v979
  %993 = vmatpush.bf16.msra.mxu0 %v978
  %994 = vmatpush.bf16.msra.mxu0 %v977
  %995 = vmatpush.bf16.msra.mxu0 %v976
  %996 = vmatpush.bf16.msra.mxu0 %v975
  %997 = vmatpush.bf16.msra.mxu0 %v974
  %998 = vmatmul.bf16.gmra.mxu0 %v756
  %v999 = vpop.f32.mrf.mxu0
  %v1000 = vadd.f32 0.0, %v999
  %v1001 = vpop.f32.mrf.mxu0
  %v1002 = vadd.f32 0.0, %v1001
  %1003 = vmatmul.bf16.gmra.mxu0 %v757
  %v1004 = vpop.f32.mrf.mxu0
  %v1005 = vadd.f32 0.0, %v1004
  %v1006 = vpop.f32.mrf.mxu0
  %v1007 = vadd.f32 0.0, %v1006
  %1008 = vdwg.mxu0
  %v1009 = vadd.f32 %v916, %v1000
  %v1010 = vadd.f32 %v918, %v1002
  %v1011 = vadd.f32 %v921, %v1005
  %v1012 = vadd.f32 %v923, %v1007
  %v1013 = vld [vmem:[%s14] sm:$0xff]
  %v1014 = vld [vmem:[%s14 + $0x8] sm:$0xff]
  %v1015 = vld [vmem:[%s14 + $0x10] sm:$0xff]
  %v1016 = vld [vmem:[%s14 + $0x18] sm:$0xff]
  %v1017 = vadd.f32 %v1013, %v1009
  %v1018 = vadd.f32 %v1014, %v1010
  %v1019 = vadd.f32 %v1015, %v1011
  %v1020 = vadd.f32 %v1016, %v1012
  %1021 = vst [vmem:[%s14] sm:$0xff] %v1017
  %1022 = vst [vmem:[%s14 + $0x8] sm:$0xff] %v1018
  %1023 = vst [vmem:[%s14 + $0x10] sm:$0xff] %v1019
  %1024 = vst [vmem:[%s14 + $0x18] sm:$0xff] %v1020
  // Predicated region
  $region58: #{residual_forward_nhwc.1} parent=0 // pred_check
    _
  $region59: #{residual_forward_nhwc.1} parent=0 // pred_check_branch
    %1026 = sbr.rel (0) target = $region61
  $region60: #{residual_forward_nhwc.1} parent=0 // pred_region
    _
  $region61: #{residual_forward_nhwc.1} parent=0 // pred_fallthru
    _
  // Predicated region
  $region62: #{residual_forward_nhwc.1} parent=0 // pred_check
    _
  $region63: #{residual_forward_nhwc.1} parent=0 // pred_check_branch
    %1028 = sbr.rel (0) target = $region65
  $region64: #{residual_forward_nhwc.1} parent=0 // pred_region
    _
  $region65: #{residual_forward_nhwc.1} parent=0 // pred_fallthru
    _

</llo_original>
